<compile_context>
chip_gen: v7x
topology: tpu7x:2x2x1
jax: 0.10.0
libtpu: 0.0.40
codegen_flags: <defaults>
</compile_context>

<pallas_src>
import functools
import math

import jax
import jax.numpy as jnp
from jax.experimental import pallas as pl
from jax.experimental.pallas import tpu as pltpu

_LANES = 128
_DEFAULT_G = 8
_VMEM_BLOCK_BUDGET = 4 * 1024 * 1024  # max bytes for one (G,R,128) block


def _clamp_group(G, n, R, C, itemsize):
    g_max = max(1, _VMEM_BLOCK_BUDGET // (R * C * itemsize))
    return int(max(1, min(G, n, g_max)))


def _vmem_limit(G, R, C, itemsize):
    blk = G * R * C * itemsize
    # double-buffered output block + headroom; cap under v7x's 64 MiB physical.
    return int(min(64 << 20, max(16 << 20, 4 * blk)))


# ---------------------------------------------------------------------------
# Gather only: out[i] = cache[seq_idxs[i]]
# ---------------------------------------------------------------------------
def _make_gather_kernel(G):
    def kernel(idx_ref, cache_hbm, out_ref, sem):
        i = pl.program_id(0)
        # G gathers in flight per grid step.
        for g in range(G):
            pltpu.make_async_copy(cache_hbm.at[idx_ref[i * G + g]],
                                  out_ref.at[g], sem.at[g]).start()
        for g in range(G):
            pltpu.make_async_copy(cache_hbm.at[idx_ref[i * G + g]],
                                  out_ref.at[g], sem.at[g]).wait()
    return kernel


@functools.partial(jax.jit, static_argnames=("G",))
def cache_gather(cache, seq_idxs, G=_DEFAULT_G):
    ncodes, R, C = cache.shape
    n = seq_idxs.shape[0]
    itemsize = cache.dtype.itemsize
    G = _clamp_group(G, n, R, C, itemsize)
    n_pad = -(-n // G) * G
    if n_pad != n:
        seq_idxs_p = jnp.concatenate(
            [seq_idxs, jnp.broadcast_to(seq_idxs[-1:], (n_pad - n,))])
    else:
        seq_idxs_p = seq_idxs

    out = pl.pallas_call(
        _make_gather_kernel(G),
        out_shape=jax.ShapeDtypeStruct((n_pad, R, C), cache.dtype),
        grid_spec=pltpu.PrefetchScalarGridSpec(
            num_scalar_prefetch=1,
            grid=(n_pad // G,),
            in_specs=[pl.BlockSpec(memory_space=pl.ANY)],        # cache in HBM
            out_specs=pl.BlockSpec((G, R, C), lambda i, idxs: (i, 0, 0)),
            scratch_shapes=[pltpu.SemaphoreType.DMA((G,))],
        ),
        compiler_params=pltpu.CompilerParams(
            dimension_semantics=("parallel",),
            vmem_limit_bytes=_vmem_limit(G, R, C, itemsize)),
        cost_estimate=pl.CostEstimate(
            flops=0, transcendentals=0,
            bytes_accessed=2 * n_pad * R * C * itemsize),
    )(seq_idxs_p, cache)
    return out[:n]


# ---------------------------------------------------------------------------
# Fused set + gather:
#   new_cache[seq_idxs[j]] = set_data[last_src[j]]   (touched entries only)
#   out[j]                 = set_data[last_src[j]]
# Old cache is aliased to the new-cache output (never streamed in-kernel).
# ---------------------------------------------------------------------------
def _make_set_gather_kernel(G):
    def kernel(idx_ref, src_ref, set_hbm, cache_in_hbm, cache_out_hbm, out_ref,
               gsem, ssem):
        del cache_in_hbm  # alias source only; untouched entries preserved via alias
        i = pl.program_id(0)
        # 1) gather set_data[last_src[j]] into the output VMEM block, G in flight.
        for g in range(G):
            pltpu.make_async_copy(set_hbm.at[src_ref[i * G + g]],
                                  out_ref.at[g], gsem.at[g]).start()
        # 2) as each slice lands, scatter it to cache[seq_idxs[j]] (idempotent).
        for g in range(G):
            pltpu.make_async_copy(set_hbm.at[src_ref[i * G + g]],
                                  out_ref.at[g], gsem.at[g]).wait()
            pltpu.make_async_copy(out_ref.at[g],
                                  cache_out_hbm.at[idx_ref[i * G + g]],
                                  ssem.at[g]).start()
        # 3) all scatters must finish before the body ends.
        for g in range(G):
            pltpu.make_async_copy(out_ref.at[g],
                                  cache_out_hbm.at[idx_ref[i * G + g]],
                                  ssem.at[g]).wait()
    return kernel


@functools.partial(jax.jit, static_argnames=("G",), donate_argnums=(0,))
def cache_set_and_gather(cache, seq_idxs, set_data, G=_DEFAULT_G):
    ncodes, R, C = cache.shape
    n = seq_idxs.shape[0]
    itemsize = cache.dtype.itemsize

    # O(n) last-write-wins: last_src[j] = last position k with seq_idxs[k]==seq_idxs[j].
    pos = jnp.arange(n, dtype=jnp.int32)
    last_writer = jnp.full((ncodes,), -1, jnp.int32).at[seq_idxs].max(pos)
    last_src = last_writer[seq_idxs].astype(jnp.int32)

    G = _clamp_group(G, n, R, C, itemsize)
    n_pad = -(-n // G) * G
    if n_pad != n:
        pad = n_pad - n
        # Padding duplicates the last real entry -> its scatter writes the same
        # bytes to the same slot (harmless); padded out rows are sliced away.
        seq_idxs_p = jnp.concatenate(
            [seq_idxs, jnp.broadcast_to(seq_idxs[-1:], (pad,))])
        last_src_p = jnp.concatenate(
            [last_src, jnp.broadcast_to(last_src[-1:], (pad,))])
    else:
        seq_idxs_p, last_src_p = seq_idxs, last_src

    new_cache, out = pl.pallas_call(
        _make_set_gather_kernel(G),
        out_shape=[
            jax.ShapeDtypeStruct((ncodes, R, C), cache.dtype),
            jax.ShapeDtypeStruct((n_pad, R, C), cache.dtype),
        ],
        grid_spec=pltpu.PrefetchScalarGridSpec(
            num_scalar_prefetch=2,                  # seq_idxs, last_src -> SMEM
            grid=(n_pad // G,),
            in_specs=[
                pl.BlockSpec(memory_space=pl.ANY),  # set_data stays in HBM
                pl.BlockSpec(memory_space=pl.ANY),  # old cache (alias source)
            ],
            out_specs=[
                pl.BlockSpec(memory_space=pl.ANY),  # new cache (aliased, DMA scatter)
                pl.BlockSpec((G, R, C), lambda i, idxs, src: (i, 0, 0)),
            ],
            scratch_shapes=[pltpu.SemaphoreType.DMA((G,)),
                            pltpu.SemaphoreType.DMA((G,))],
        ),
        # args = (seq_idxs, last_src, set_data, cache); alias indices count the
        # scalar-prefetch operands, so cache (arg 3) aliases new_cache (out 0).
        input_output_aliases={3: 0},
        # Duplicate writes are byte-identical (last_src) and out blocks are
        # disjoint -> parallel is safe; lets v7x split across its 2 TCs.
        compiler_params=pltpu.CompilerParams(
            dimension_semantics=("parallel",),
            vmem_limit_bytes=_vmem_limit(G, R, C, itemsize)),
        cost_estimate=pl.CostEstimate(
            flops=0, transcendentals=0,
            bytes_accessed=3 * n_pad * R * C * itemsize),
    )(seq_idxs_p, last_src_p, set_data, cache)
    return new_cache, out[:n]


# ---------------------------------------------------------------------------
# Functional EncoderCache
# ---------------------------------------------------------------------------
class EncoderCache:
    """Functional JAX/Pallas EncoderCache.

    Cache state is an explicit array held in `self.cache`, stored lane-dense as
    (ncodes, R, 128) in `dtype` (entries flattened + zero padded, R a multiple
    of the dtype's sublane count).
    """

    LANES = _LANES

    def __init__(self, ncodes=None, shape=None, dtype=jnp.float32):
        if ncodes is None or shape is None:
            self.cache = None
            return
        if isinstance(shape, int):
            shape = (shape,)
        self.ncodes = int(ncodes)
        self.entry_shape = tuple(int(s) for s in shape)
        self.entry_size = int(math.prod(self.entry_shape))
        self.dtype = jnp.dtype(dtype)
        sublanes = {4: 8, 2: 16, 1: 32}.get(self.dtype.itemsize, 8)
        rows = -(-self.entry_size // self.LANES)          # ceil(E / 128)
        rows = -(-rows // sublanes) * sublanes            # round up to sublane mult
        self._R = max(rows, sublanes)
        self._C = self.LANES
        # TODO(synk): for entry_size << 1024 pack several logical entries per
        # (8,128) tile to avoid padding-dominated HBM traffic.
        # nn.Parameter(torch.zeros(shape)) for each code -> zero init.
        self.cache = jnp.zeros((self.ncodes, self._R, self._C), dtype=self.dtype)

    # -- lane-dense (un)packing --------------------------------------------
    def _pack(self, x):
        n = x.shape[0]
        flat = jnp.asarray(x, self.cache.dtype).reshape(n, self.entry_size)
        pad = self._R * self._C - self.entry_size
        if pad:
            flat = jnp.pad(flat, ((0, 0), (0, pad)))
        return flat.reshape(n, self._R, self._C)

    def _unpack(self, y):
        n = y.shape[0]
        flat = y.reshape(n, self._R * self._C)[:, : self.entry_size]
        return flat.reshape((n,) + self.entry_shape)

    def logical_cache(self):
        return self._unpack(self.cache)

    # -- forward -------------------------------------------------------------
    def forward(self, seq_idxs, set_data=None):
        if self.cache is None:
            return None
        # Python-list-style indexing (negatives wrap); also keeps any index
        # inside [0, ncodes) so a data-dependent DMA cannot fault.
        seq_idxs = jnp.asarray(seq_idxs, jnp.int32) % self.ncodes
        if set_data is not None:
            # Set path runs jitted with the cache donated, so the in-kernel
            # input_output_aliases updates the cache truly in place.
            self.cache, out = cache_set_and_gather(
                self.cache, seq_idxs, self._pack(set_data))
        else:
            out = cache_gather(self.cache, seq_idxs)
        return self._unpack(out)

    __call__ = forward


# ---------------------------------------------------------------------------
# Reference (pure JAX) for verification
# ---------------------------------------------------------------------------
def ref_forward(cache, seq_idxs, set_data=None):
    c = cache
    if set_data is not None:
        for i in range(seq_idxs.shape[0]):
            c = c.at[int(seq_idxs[i])].set(set_data[i])
    return c[seq_idxs], c


if __name__ == "__main__":
    key = jax.random.PRNGKey(0)
    k1, k2, k3, k4 = jax.random.split(key, 4)

    # ---- test 1: aligned entry shape, duplicates, n > G (padding path) -----
    ncodes, entry_shape = 8, (16, 128)
    mod = EncoderCache(ncodes=ncodes, shape=entry_shape)

    # seed every entry through the kernel itself
    init_vals = jax.random.normal(k1, (ncodes,) + entry_shape, dtype=jnp.float32)
    mod.forward(jnp.arange(ncodes, dtype=jnp.int32), init_vals)

    seq_idxs = jnp.array([3, 1, 3, 5, 0, 7, 2, 3, 6, 1], dtype=jnp.int32)
    n = seq_idxs.shape[0]
    set_data = jax.random.normal(k2, (n,) + entry_shape, dtype=jnp.float32)

    out_set = jax.block_until_ready(mod.forward(seq_idxs, set_data))
    out_get = jax.block_until_ready(mod.forward(seq_idxs))
    new_cache = jax.block_until_ready(mod.logical_cache())

    ref_out, ref_cache = ref_forward(init_vals, seq_idxs, set_data)
    ref_get, _ = ref_forward(ref_cache, seq_idxs)

    assert jnp.allclose(out_set, ref_out), "set+gather mismatch"
    assert jnp.allclose(new_cache, ref_cache), "cache-state mismatch"
    assert jnp.allclose(out_get, ref_get), "gather mismatch"

    # ---- test 2: ragged entry shape (lane padding path), zero-init cache ---
    ncodes2, shape2 = 6, (5, 7)
    mod2 = EncoderCache(ncodes=ncodes2, shape=shape2)
    idxs2 = jnp.array([2, 0, 2], dtype=jnp.int32)
    data2 = jax.random.normal(k3, (3,) + shape2, dtype=jnp.float32)

    out2 = jax.block_until_ready(mod2.forward(idxs2, data2))
    get_idxs2 = jnp.array([4, 2], dtype=jnp.int32)
    get2 = jax.block_until_ready(mod2.forward(get_idxs2))

    zero_cache = jnp.zeros((ncodes2,) + shape2, dtype=jnp.float32)
    ref_out2, ref_cache2 = ref_forward(zero_cache, idxs2, data2)
    ref_get2, _ = ref_forward(ref_cache2, get_idxs2)

    assert jnp.allclose(out2, ref_out2), "ragged set+gather mismatch"
    assert jnp.allclose(mod2.logical_cache(), ref_cache2), "ragged cache-state mismatch"
    assert jnp.allclose(get2, ref_get2), "ragged gather mismatch"

    # ---- test 3: bf16 storage (dtype-aware layout / traffic) ---------------
    ncodes3, shape3 = 4, (8, 128)
    mod3 = EncoderCache(ncodes=ncodes3, shape=shape3, dtype=jnp.bfloat16)
    idxs3 = jnp.array([1, 3, 1], dtype=jnp.int32)
    data3 = jax.random.normal(k4, (3,) + shape3, dtype=jnp.float32)

    out3 = jax.block_until_ready(mod3.forward(idxs3, data3))
    get3 = jax.block_until_ready(mod3.forward(jnp.array([0, 1], dtype=jnp.int32)))

    data3_bf = data3.astype(jnp.bfloat16)
    ref_out3, ref_cache3 = ref_forward(
        jnp.zeros((ncodes3,) + shape3, jnp.bfloat16), idxs3, data3_bf)
    ref_get3, _ = ref_forward(ref_cache3, jnp.array([0, 1], dtype=jnp.int32))

    assert jnp.allclose(out3.astype(jnp.float32), ref_out3.astype(jnp.float32)), \
        "bf16 set+gather mismatch"
    assert jnp.allclose(get3.astype(jnp.float32), ref_get3.astype(jnp.float32)), \
        "bf16 gather mismatch"

    print("KERNEL_OK")
</pallas_src>

<mosaic_0001>
module attributes {stable_mosaic.version = 11 : i64} {
  func.func @kernel(%arg0: i32, %arg1: memref<8xi32, #tpu.memory_space<smem>>, %arg2: memref<8xi32, #tpu.memory_space<smem>>, %arg3: memref<8x16x128xf32, #tpu.memory_space<any>>, %arg4: memref<8x16x128xf32, #tpu.memory_space<any>>, %arg5: memref<8x16x128xf32, #tpu.memory_space<any>>, %arg6: memref<8x16x128xf32, #tpu.memory_space<vmem>>, %arg7: memref<8x!tpu.dma_semaphore, #tpu.memory_space<semaphore_mem>>, %arg8: memref<8x!tpu.dma_semaphore, #tpu.memory_space<semaphore_mem>>) attributes {dimension_semantics = [#tpu.dimension_semantics<parallel>], iteration_bounds = array<i64: 1>, scalar_prefetch = 2 : i64, scratch_operands = 2 : i64, tpu.core_type = #tpu.core_type<tc>, window_params = [{}, {}, {}, {transform_indices = @transform_3, window_bounds = array<i64: 8, 16, 128>}]} {
    %c8_i32 = arith.constant 8 : i32
    %0 = arith.muli %arg0, %c8_i32 : i32
    %c0_i32 = arith.constant 0 : i32
    %1 = arith.addi %0, %c0_i32 : i32
    %2 = arith.index_cast %1 : i32 to index
    %3 = memref.load %arg2[%2] : memref<8xi32, #tpu.memory_space<smem>>
    %c0_i32_0 = arith.constant 0 : i32
    %c0_i32_1 = arith.constant 0 : i32
    %c0_i32_2 = arith.constant 0 : i32
    %c0_i32_3 = arith.constant 0 : i32
    %4 = tpu.memref_slice %arg3[%3, %c0_i32_2, %c0_i32_3] : memref<8x16x128xf32, #tpu.memory_space<any>> -> memref<1x16x128xf32, #tpu.memory_space<any>>
    %5 = tpu.memref_squeeze %4 : memref<1x16x128xf32, #tpu.memory_space<any>> -> memref<16x128xf32, #tpu.memory_space<any>>
    %c0_i32_4 = arith.constant 0 : i32
    %c0_i32_5 = arith.constant 0 : i32
    %6 = tpu.memref_slice %arg6[%c0_i32_0, %c0_i32_4, %c0_i32_5] : memref<8x16x128xf32, #tpu.memory_space<vmem>> -> memref<1x16x128xf32, #tpu.memory_space<vmem>>
    %7 = tpu.memref_squeeze %6 : memref<1x16x128xf32, #tpu.memory_space<vmem>> -> memref<16x128xf32, #tpu.memory_space<vmem>>
    %8 = tpu.memref_slice %arg7[%c0_i32_1] : memref<8x!tpu.dma_semaphore, #tpu.memory_space<semaphore_mem>> -> memref<1x!tpu.dma_semaphore, #tpu.memory_space<semaphore_mem>>
    %9 = tpu.memref_squeeze %8 : memref<1x!tpu.dma_semaphore, #tpu.memory_space<semaphore_mem>> -> memref<!tpu.dma_semaphore, #tpu.memory_space<semaphore_mem>>
    tpu.enqueue_dma source(%5 : memref<16x128xf32, #tpu.memory_space<any>>) target(%7 : memref<16x128xf32, #tpu.memory_space<vmem>>) target_semaphore(%9 : memref<!tpu.dma_semaphore, #tpu.memory_space<semaphore_mem>>)
    %c8_i32_6 = arith.constant 8 : i32
    %10 = arith.muli %arg0, %c8_i32_6 : i32
    %c1_i32 = arith.constant 1 : i32
    %11 = arith.addi %10, %c1_i32 : i32
    %12 = arith.index_cast %11 : i32 to index
    %13 = memref.load %arg2[%12] : memref<8xi32, #tpu.memory_space<smem>>
    %c1_i32_7 = arith.constant 1 : i32
    %c1_i32_8 = arith.constant 1 : i32
    %c0_i32_9 = arith.constant 0 : i32
    %c0_i32_10 = arith.constant 0 : i32
    %14 = tpu.memref_slice %arg3[%13, %c0_i32_9, %c0_i32_10] : memref<8x16x128xf32, #tpu.memory_space<any>> -> memref<1x16x128xf32, #tpu.memory_space<any>>
    %15 = tpu.memref_squeeze %14 : memref<1x16x128xf32, #tpu.memory_space<any>> -> memref<16x128xf32, #tpu.memory_space<any>>
    %c0_i32_11 = arith.constant 0 : i32
    %c0_i32_12 = arith.constant 0 : i32
    %16 = tpu.memref_slice %arg6[%c1_i32_7, %c0_i32_11, %c0_i32_12] : memref<8x16x128xf32, #tpu.memory_space<vmem>> -> memref<1x16x128xf32, #tpu.memory_space<vmem>>
    %17 = tpu.memref_squeeze %16 : memref<1x16x128xf32, #tpu.memory_space<vmem>> -> memref<16x128xf32, #tpu.memory_space<vmem>>
    %18 = tpu.memref_slice %arg7[%c1_i32_8] : memref<8x!tpu.dma_semaphore, #tpu.memory_space<semaphore_mem>> -> memref<1x!tpu.dma_semaphore, #tpu.memory_space<semaphore_mem>>
    %19 = tpu.memref_squeeze %18 : memref<1x!tpu.dma_semaphore, #tpu.memory_space<semaphore_mem>> -> memref<!tpu.dma_semaphore, #tpu.memory_space<semaphore_mem>>
    tpu.enqueue_dma source(%15 : memref<16x128xf32, #tpu.memory_space<any>>) target(%17 : memref<16x128xf32, #tpu.memory_space<vmem>>) target_semaphore(%19 : memref<!tpu.dma_semaphore, #tpu.memory_space<semaphore_mem>>)
    %c8_i32_13 = arith.constant 8 : i32
    %20 = arith.muli %arg0, %c8_i32_13 : i32
    %c2_i32 = arith.constant 2 : i32
    %21 = arith.addi %20, %c2_i32 : i32
    %22 = arith.index_cast %21 : i32 to index
    %23 = memref.load %arg2[%22] : memref<8xi32, #tpu.memory_space<smem>>
    %c2_i32_14 = arith.constant 2 : i32
    %c2_i32_15 = arith.constant 2 : i32
    %c0_i32_16 = arith.constant 0 : i32
    %c0_i32_17 = arith.constant 0 : i32
    %24 = tpu.memref_slice %arg3[%23, %c0_i32_16, %c0_i32_17] : memref<8x16x128xf32, #tpu.memory_space<any>> -> memref<1x16x128xf32, #tpu.memory_space<any>>
    %25 = tpu.memref_squeeze %24 : memref<1x16x128xf32, #tpu.memory_space<any>> -> memref<16x128xf32, #tpu.memory_space<any>>
    %c0_i32_18 = arith.constant 0 : i32
    %c0_i32_19 = arith.constant 0 : i32
    %26 = tpu.memref_slice %arg6[%c2_i32_14, %c0_i32_18, %c0_i32_19] : memref<8x16x128xf32, #tpu.memory_space<vmem>> -> memref<1x16x128xf32, #tpu.memory_space<vmem>>
    %27 = tpu.memref_squeeze %26 : memref<1x16x128xf32, #tpu.memory_space<vmem>> -> memref<16x128xf32, #tpu.memory_space<vmem>>
    %28 = tpu.memref_slice %arg7[%c2_i32_15] : memref<8x!tpu.dma_semaphore, #tpu.memory_space<semaphore_mem>> -> memref<1x!tpu.dma_semaphore, #tpu.memory_space<semaphore_mem>>
    %29 = tpu.memref_squeeze %28 : memref<1x!tpu.dma_semaphore, #tpu.memory_space<semaphore_mem>> -> memref<!tpu.dma_semaphore, #tpu.memory_space<semaphore_mem>>
    tpu.enqueue_dma source(%25 : memref<16x128xf32, #tpu.memory_space<any>>) target(%27 : memref<16x128xf32, #tpu.memory_space<vmem>>) target_semaphore(%29 : memref<!tpu.dma_semaphore, #tpu.memory_space<semaphore_mem>>)
    %c8_i32_20 = arith.constant 8 : i32
    %30 = arith.muli %arg0, %c8_i32_20 : i32
    %c3_i32 = arith.constant 3 : i32
    %31 = arith.addi %30, %c3_i32 : i32
    %32 = arith.index_cast %31 : i32 to index
    %33 = memref.load %arg2[%32] : memref<8xi32, #tpu.memory_space<smem>>
    %c3_i32_21 = arith.constant 3 : i32
    %c3_i32_22 = arith.constant 3 : i32
    %c0_i32_23 = arith.constant 0 : i32
    %c0_i32_24 = arith.constant 0 : i32
    %34 = tpu.memref_slice %arg3[%33, %c0_i32_23, %c0_i32_24] : memref<8x16x128xf32, #tpu.memory_space<any>> -> memref<1x16x128xf32, #tpu.memory_space<any>>
    %35 = tpu.memref_squeeze %34 : memref<1x16x128xf32, #tpu.memory_space<any>> -> memref<16x128xf32, #tpu.memory_space<any>>
    %c0_i32_25 = arith.constant 0 : i32
    %c0_i32_26 = arith.constant 0 : i32
    %36 = tpu.memref_slice %arg6[%c3_i32_21, %c0_i32_25, %c0_i32_26] : memref<8x16x128xf32, #tpu.memory_space<vmem>> -> memref<1x16x128xf32, #tpu.memory_space<vmem>>
    %37 = tpu.memref_squeeze %36 : memref<1x16x128xf32, #tpu.memory_space<vmem>> -> memref<16x128xf32, #tpu.memory_space<vmem>>
    %38 = tpu.memref_slice %arg7[%c3_i32_22] : memref<8x!tpu.dma_semaphore, #tpu.memory_space<semaphore_mem>> -> memref<1x!tpu.dma_semaphore, #tpu.memory_space<semaphore_mem>>
    %39 = tpu.memref_squeeze %38 : memref<1x!tpu.dma_semaphore, #tpu.memory_space<semaphore_mem>> -> memref<!tpu.dma_semaphore, #tpu.memory_space<semaphore_mem>>
    tpu.enqueue_dma source(%35 : memref<16x128xf32, #tpu.memory_space<any>>) target(%37 : memref<16x128xf32, #tpu.memory_space<vmem>>) target_semaphore(%39 : memref<!tpu.dma_semaphore, #tpu.memory_space<semaphore_mem>>)
    %c8_i32_27 = arith.constant 8 : i32
    %40 = arith.muli %arg0, %c8_i32_27 : i32
    %c4_i32 = arith.constant 4 : i32
    %41 = arith.addi %40, %c4_i32 : i32
    %42 = arith.index_cast %41 : i32 to index
    %43 = memref.load %arg2[%42] : memref<8xi32, #tpu.memory_space<smem>>
    %c4_i32_28 = arith.constant 4 : i32
    %c4_i32_29 = arith.constant 4 : i32
    %c0_i32_30 = arith.constant 0 : i32
    %c0_i32_31 = arith.constant 0 : i32
    %44 = tpu.memref_slice %arg3[%43, %c0_i32_30, %c0_i32_31] : memref<8x16x128xf32, #tpu.memory_space<any>> -> memref<1x16x128xf32, #tpu.memory_space<any>>
    %45 = tpu.memref_squeeze %44 : memref<1x16x128xf32, #tpu.memory_space<any>> -> memref<16x128xf32, #tpu.memory_space<any>>
    %c0_i32_32 = arith.constant 0 : i32
    %c0_i32_33 = arith.constant 0 : i32
    %46 = tpu.memref_slice %arg6[%c4_i32_28, %c0_i32_32, %c0_i32_33] : memref<8x16x128xf32, #tpu.memory_space<vmem>> -> memref<1x16x128xf32, #tpu.memory_space<vmem>>
    %47 = tpu.memref_squeeze %46 : memref<1x16x128xf32, #tpu.memory_space<vmem>> -> memref<16x128xf32, #tpu.memory_space<vmem>>
    %48 = tpu.memref_slice %arg7[%c4_i32_29] : memref<8x!tpu.dma_semaphore, #tpu.memory_space<semaphore_mem>> -> memref<1x!tpu.dma_semaphore, #tpu.memory_space<semaphore_mem>>
    %49 = tpu.memref_squeeze %48 : memref<1x!tpu.dma_semaphore, #tpu.memory_space<semaphore_mem>> -> memref<!tpu.dma_semaphore, #tpu.memory_space<semaphore_mem>>
    tpu.enqueue_dma source(%45 : memref<16x128xf32, #tpu.memory_space<any>>) target(%47 : memref<16x128xf32, #tpu.memory_space<vmem>>) target_semaphore(%49 : memref<!tpu.dma_semaphore, #tpu.memory_space<semaphore_mem>>)
    %c8_i32_34 = arith.constant 8 : i32
    %50 = arith.muli %arg0, %c8_i32_34 : i32
    %c5_i32 = arith.constant 5 : i32
    %51 = arith.addi %50, %c5_i32 : i32
    %52 = arith.index_cast %51 : i32 to index
    %53 = memref.load %arg2[%52] : memref<8xi32, #tpu.memory_space<smem>>
    %c5_i32_35 = arith.constant 5 : i32
    %c5_i32_36 = arith.constant 5 : i32
    %c0_i32_37 = arith.constant 0 : i32
    %c0_i32_38 = arith.constant 0 : i32
    %54 = tpu.memref_slice %arg3[%53, %c0_i32_37, %c0_i32_38] : memref<8x16x128xf32, #tpu.memory_space<any>> -> memref<1x16x128xf32, #tpu.memory_space<any>>
    %55 = tpu.memref_squeeze %54 : memref<1x16x128xf32, #tpu.memory_space<any>> -> memref<16x128xf32, #tpu.memory_space<any>>
    %c0_i32_39 = arith.constant 0 : i32
    %c0_i32_40 = arith.constant 0 : i32
    %56 = tpu.memref_slice %arg6[%c5_i32_35, %c0_i32_39, %c0_i32_40] : memref<8x16x128xf32, #tpu.memory_space<vmem>> -> memref<1x16x128xf32, #tpu.memory_space<vmem>>
    %57 = tpu.memref_squeeze %56 : memref<1x16x128xf32, #tpu.memory_space<vmem>> -> memref<16x128xf32, #tpu.memory_space<vmem>>
    %58 = tpu.memref_slice %arg7[%c5_i32_36] : memref<8x!tpu.dma_semaphore, #tpu.memory_space<semaphore_mem>> -> memref<1x!tpu.dma_semaphore, #tpu.memory_space<semaphore_mem>>
    %59 = tpu.memref_squeeze %58 : memref<1x!tpu.dma_semaphore, #tpu.memory_space<semaphore_mem>> -> memref<!tpu.dma_semaphore, #tpu.memory_space<semaphore_mem>>
    tpu.enqueue_dma source(%55 : memref<16x128xf32, #tpu.memory_space<any>>) target(%57 : memref<16x128xf32, #tpu.memory_space<vmem>>) target_semaphore(%59 : memref<!tpu.dma_semaphore, #tpu.memory_space<semaphore_mem>>)
    %c8_i32_41 = arith.constant 8 : i32
    %60 = arith.muli %arg0, %c8_i32_41 : i32
    %c6_i32 = arith.constant 6 : i32
    %61 = arith.addi %60, %c6_i32 : i32
    %62 = arith.index_cast %61 : i32 to index
    %63 = memref.load %arg2[%62] : memref<8xi32, #tpu.memory_space<smem>>
    %c6_i32_42 = arith.constant 6 : i32
    %c6_i32_43 = arith.constant 6 : i32
    %c0_i32_44 = arith.constant 0 : i32
    %c0_i32_45 = arith.constant 0 : i32
    %64 = tpu.memref_slice %arg3[%63, %c0_i32_44, %c0_i32_45] : memref<8x16x128xf32, #tpu.memory_space<any>> -> memref<1x16x128xf32, #tpu.memory_space<any>>
    %65 = tpu.memref_squeeze %64 : memref<1x16x128xf32, #tpu.memory_space<any>> -> memref<16x128xf32, #tpu.memory_space<any>>
    %c0_i32_46 = arith.constant 0 : i32
    %c0_i32_47 = arith.constant 0 : i32
    %66 = tpu.memref_slice %arg6[%c6_i32_42, %c0_i32_46, %c0_i32_47] : memref<8x16x128xf32, #tpu.memory_space<vmem>> -> memref<1x16x128xf32, #tpu.memory_space<vmem>>
    %67 = tpu.memref_squeeze %66 : memref<1x16x128xf32, #tpu.memory_space<vmem>> -> memref<16x128xf32, #tpu.memory_space<vmem>>
    %68 = tpu.memref_slice %arg7[%c6_i32_43] : memref<8x!tpu.dma_semaphore, #tpu.memory_space<semaphore_mem>> -> memref<1x!tpu.dma_semaphore, #tpu.memory_space<semaphore_mem>>
    %69 = tpu.memref_squeeze %68 : memref<1x!tpu.dma_semaphore, #tpu.memory_space<semaphore_mem>> -> memref<!tpu.dma_semaphore, #tpu.memory_space<semaphore_mem>>
    tpu.enqueue_dma source(%65 : memref<16x128xf32, #tpu.memory_space<any>>) target(%67 : memref<16x128xf32, #tpu.memory_space<vmem>>) target_semaphore(%69 : memref<!tpu.dma_semaphore, #tpu.memory_space<semaphore_mem>>)
    %c8_i32_48 = arith.constant 8 : i32
    %70 = arith.muli %arg0, %c8_i32_48 : i32
    %c7_i32 = arith.constant 7 : i32
    %71 = arith.addi %70, %c7_i32 : i32
    %72 = arith.index_cast %71 : i32 to index
    %73 = memref.load %arg2[%72] : memref<8xi32, #tpu.memory_space<smem>>
    %c7_i32_49 = arith.constant 7 : i32
    %c7_i32_50 = arith.constant 7 : i32
    %c0_i32_51 = arith.constant 0 : i32
    %c0_i32_52 = arith.constant 0 : i32
    %74 = tpu.memref_slice %arg3[%73, %c0_i32_51, %c0_i32_52] : memref<8x16x128xf32, #tpu.memory_space<any>> -> memref<1x16x128xf32, #tpu.memory_space<any>>
    %75 = tpu.memref_squeeze %74 : memref<1x16x128xf32, #tpu.memory_space<any>> -> memref<16x128xf32, #tpu.memory_space<any>>
    %c0_i32_53 = arith.constant 0 : i32
    %c0_i32_54 = arith.constant 0 : i32
    %76 = tpu.memref_slice %arg6[%c7_i32_49, %c0_i32_53, %c0_i32_54] : memref<8x16x128xf32, #tpu.memory_space<vmem>> -> memref<1x16x128xf32, #tpu.memory_space<vmem>>
    %77 = tpu.memref_squeeze %76 : memref<1x16x128xf32, #tpu.memory_space<vmem>> -> memref<16x128xf32, #tpu.memory_space<vmem>>
    %78 = tpu.memref_slice %arg7[%c7_i32_50] : memref<8x!tpu.dma_semaphore, #tpu.memory_space<semaphore_mem>> -> memref<1x!tpu.dma_semaphore, #tpu.memory_space<semaphore_mem>>
    %79 = tpu.memref_squeeze %78 : memref<1x!tpu.dma_semaphore, #tpu.memory_space<semaphore_mem>> -> memref<!tpu.dma_semaphore, #tpu.memory_space<semaphore_mem>>
    tpu.enqueue_dma source(%75 : memref<16x128xf32, #tpu.memory_space<any>>) target(%77 : memref<16x128xf32, #tpu.memory_space<vmem>>) target_semaphore(%79 : memref<!tpu.dma_semaphore, #tpu.memory_space<semaphore_mem>>)
    %c8_i32_55 = arith.constant 8 : i32
    %80 = arith.muli %arg0, %c8_i32_55 : i32
    %c0_i32_56 = arith.constant 0 : i32
    %81 = arith.addi %80, %c0_i32_56 : i32
    %82 = arith.index_cast %81 : i32 to index
    %83 = memref.load %arg2[%82] : memref<8xi32, #tpu.memory_space<smem>>
    %c0_i32_57 = arith.constant 0 : i32
    %c0_i32_58 = arith.constant 0 : i32
    %c0_i32_59 = arith.constant 0 : i32
    %c0_i32_60 = arith.constant 0 : i32
    %84 = tpu.memref_slice %arg3[%83, %c0_i32_59, %c0_i32_60] : memref<8x16x128xf32, #tpu.memory_space<any>> -> memref<1x16x128xf32, #tpu.memory_space<any>>
    %85 = tpu.memref_squeeze %84 : memref<1x16x128xf32, #tpu.memory_space<any>> -> memref<16x128xf32, #tpu.memory_space<any>>
    %c0_i32_61 = arith.constant 0 : i32
    %c0_i32_62 = arith.constant 0 : i32
    %86 = tpu.memref_slice %arg6[%c0_i32_57, %c0_i32_61, %c0_i32_62] : memref<8x16x128xf32, #tpu.memory_space<vmem>> -> memref<1x16x128xf32, #tpu.memory_space<vmem>>
    %87 = tpu.memref_squeeze %86 : memref<1x16x128xf32, #tpu.memory_space<vmem>> -> memref<16x128xf32, #tpu.memory_space<vmem>>
    %88 = tpu.memref_slice %arg7[%c0_i32_58] : memref<8x!tpu.dma_semaphore, #tpu.memory_space<semaphore_mem>> -> memref<1x!tpu.dma_semaphore, #tpu.memory_space<semaphore_mem>>
    %89 = tpu.memref_squeeze %88 : memref<1x!tpu.dma_semaphore, #tpu.memory_space<semaphore_mem>> -> memref<!tpu.dma_semaphore, #tpu.memory_space<semaphore_mem>>
    tpu.wait_dma2 semaphore(%89 : memref<!tpu.dma_semaphore, #tpu.memory_space<semaphore_mem>>) src(%85 : memref<16x128xf32, #tpu.memory_space<any>>) dst(%87 : memref<16x128xf32, #tpu.memory_space<vmem>>)
    %c8_i32_63 = arith.constant 8 : i32
    %90 = arith.muli %arg0, %c8_i32_63 : i32
    %c0_i32_64 = arith.constant 0 : i32
    %91 = arith.addi %90, %c0_i32_64 : i32
    %92 = arith.index_cast %91 : i32 to index
    %93 = memref.load %arg1[%92] : memref<8xi32, #tpu.memory_space<smem>>
    %c0_i32_65 = arith.constant 0 : i32
    %c0_i32_66 = arith.constant 0 : i32
    %c0_i32_67 = arith.constant 0 : i32
    %c0_i32_68 = arith.constant 0 : i32
    %94 = tpu.memref_slice %arg6[%c0_i32_65, %c0_i32_67, %c0_i32_68] : memref<8x16x128xf32, #tpu.memory_space<vmem>> -> memref<1x16x128xf32, #tpu.memory_space<vmem>>
    %95 = tpu.memref_squeeze %94 : memref<1x16x128xf32, #tpu.memory_space<vmem>> -> memref<16x128xf32, #tpu.memory_space<vmem>>
    %c0_i32_69 = arith.constant 0 : i32
    %c0_i32_70 = arith.constant 0 : i32
    %96 = tpu.memref_slice %arg5[%93, %c0_i32_69, %c0_i32_70] : memref<8x16x128xf32, #tpu.memory_space<any>> -> memref<1x16x128xf32, #tpu.memory_space<any>>
    %97 = tpu.memref_squeeze %96 : memref<1x16x128xf32, #tpu.memory_space<any>> -> memref<16x128xf32, #tpu.memory_space<any>>
    %98 = tpu.memref_slice %arg8[%c0_i32_66] : memref<8x!tpu.dma_semaphore, #tpu.memory_space<semaphore_mem>> -> memref<1x!tpu.dma_semaphore, #tpu.memory_space<semaphore_mem>>
    %99 = tpu.memref_squeeze %98 : memref<1x!tpu.dma_semaphore, #tpu.memory_space<semaphore_mem>> -> memref<!tpu.dma_semaphore, #tpu.memory_space<semaphore_mem>>
    tpu.enqueue_dma source(%95 : memref<16x128xf32, #tpu.memory_space<vmem>>) target(%97 : memref<16x128xf32, #tpu.memory_space<any>>) target_semaphore(%99 : memref<!tpu.dma_semaphore, #tpu.memory_space<semaphore_mem>>)
    %c8_i32_71 = arith.constant 8 : i32
    %100 = arith.muli %arg0, %c8_i32_71 : i32
    %c1_i32_72 = arith.constant 1 : i32
    %101 = arith.addi %100, %c1_i32_72 : i32
    %102 = arith.index_cast %101 : i32 to index
    %103 = memref.load %arg2[%102] : memref<8xi32, #tpu.memory_space<smem>>
    %c1_i32_73 = arith.constant 1 : i32
    %c1_i32_74 = arith.constant 1 : i32
    %c0_i32_75 = arith.constant 0 : i32
    %c0_i32_76 = arith.constant 0 : i32
    %104 = tpu.memref_slice %arg3[%103, %c0_i32_75, %c0_i32_76] : memref<8x16x128xf32, #tpu.memory_space<any>> -> memref<1x16x128xf32, #tpu.memory_space<any>>
    %105 = tpu.memref_squeeze %104 : memref<1x16x128xf32, #tpu.memory_space<any>> -> memref<16x128xf32, #tpu.memory_space<any>>
    %c0_i32_77 = arith.constant 0 : i32
    %c0_i32_78 = arith.constant 0 : i32
    %106 = tpu.memref_slice %arg6[%c1_i32_73, %c0_i32_77, %c0_i32_78] : memref<8x16x128xf32, #tpu.memory_space<vmem>> -> memref<1x16x128xf32, #tpu.memory_space<vmem>>
    %107 = tpu.memref_squeeze %106 : memref<1x16x128xf32, #tpu.memory_space<vmem>> -> memref<16x128xf32, #tpu.memory_space<vmem>>
    %108 = tpu.memref_slice %arg7[%c1_i32_74] : memref<8x!tpu.dma_semaphore, #tpu.memory_space<semaphore_mem>> -> memref<1x!tpu.dma_semaphore, #tpu.memory_space<semaphore_mem>>
    %109 = tpu.memref_squeeze %108 : memref<1x!tpu.dma_semaphore, #tpu.memory_space<semaphore_mem>> -> memref<!tpu.dma_semaphore, #tpu.memory_space<semaphore_mem>>
    tpu.wait_dma2 semaphore(%109 : memref<!tpu.dma_semaphore, #tpu.memory_space<semaphore_mem>>) src(%105 : memref<16x128xf32, #tpu.memory_space<any>>) dst(%107 : memref<16x128xf32, #tpu.memory_space<vmem>>)
    %c8_i32_79 = arith.constant 8 : i32
    %110 = arith.muli %arg0, %c8_i32_79 : i32
    %c1_i32_80 = arith.constant 1 : i32
    %111 = arith.addi %110, %c1_i32_80 : i32
    %112 = arith.index_cast %111 : i32 to index
    %113 = memref.load %arg1[%112] : memref<8xi32, #tpu.memory_space<smem>>
    %c1_i32_81 = arith.constant 1 : i32
    %c1_i32_82 = arith.constant 1 : i32
    %c0_i32_83 = arith.constant 0 : i32
    %c0_i32_84 = arith.constant 0 : i32
    %114 = tpu.memref_slice %arg6[%c1_i32_81, %c0_i32_83, %c0_i32_84] : memref<8x16x128xf32, #tpu.memory_space<vmem>> -> memref<1x16x128xf32, #tpu.memory_space<vmem>>
    %115 = tpu.memref_squeeze %114 : memref<1x16x128xf32, #tpu.memory_space<vmem>> -> memref<16x128xf32, #tpu.memory_space<vmem>>
    %c0_i32_85 = arith.constant 0 : i32
    %c0_i32_86 = arith.constant 0 : i32
    %116 = tpu.memref_slice %arg5[%113, %c0_i32_85, %c0_i32_86] : memref<8x16x128xf32, #tpu.memory_space<any>> -> memref<1x16x128xf32, #tpu.memory_space<any>>
    %117 = tpu.memref_squeeze %116 : memref<1x16x128xf32, #tpu.memory_space<any>> -> memref<16x128xf32, #tpu.memory_space<any>>
    %118 = tpu.memref_slice %arg8[%c1_i32_82] : memref<8x!tpu.dma_semaphore, #tpu.memory_space<semaphore_mem>> -> memref<1x!tpu.dma_semaphore, #tpu.memory_space<semaphore_mem>>
    %119 = tpu.memref_squeeze %118 : memref<1x!tpu.dma_semaphore, #tpu.memory_space<semaphore_mem>> -> memref<!tpu.dma_semaphore, #tpu.memory_space<semaphore_mem>>
    tpu.enqueue_dma source(%115 : memref<16x128xf32, #tpu.memory_space<vmem>>) target(%117 : memref<16x128xf32, #tpu.memory_space<any>>) target_semaphore(%119 : memref<!tpu.dma_semaphore, #tpu.memory_space<semaphore_mem>>)
    %c8_i32_87 = arith.constant 8 : i32
    %120 = arith.muli %arg0, %c8_i32_87 : i32
    %c2_i32_88 = arith.constant 2 : i32
    %121 = arith.addi %120, %c2_i32_88 : i32
    %122 = arith.index_cast %121 : i32 to index
    %123 = memref.load %arg2[%122] : memref<8xi32, #tpu.memory_space<smem>>
    %c2_i32_89 = arith.constant 2 : i32
    %c2_i32_90 = arith.constant 2 : i32
    %c0_i32_91 = arith.constant 0 : i32
    %c0_i32_92 = arith.constant 0 : i32
    %124 = tpu.memref_slice %arg3[%123, %c0_i32_91, %c0_i32_92] : memref<8x16x128xf32, #tpu.memory_space<any>> -> memref<1x16x128xf32, #tpu.memory_space<any>>
    %125 = tpu.memref_squeeze %124 : memref<1x16x128xf32, #tpu.memory_space<any>> -> memref<16x128xf32, #tpu.memory_space<any>>
    %c0_i32_93 = arith.constant 0 : i32
    %c0_i32_94 = arith.constant 0 : i32
    %126 = tpu.memref_slice %arg6[%c2_i32_89, %c0_i32_93, %c0_i32_94] : memref<8x16x128xf32, #tpu.memory_space<vmem>> -> memref<1x16x128xf32, #tpu.memory_space<vmem>>
    %127 = tpu.memref_squeeze %126 : memref<1x16x128xf32, #tpu.memory_space<vmem>> -> memref<16x128xf32, #tpu.memory_space<vmem>>
    %128 = tpu.memref_slice %arg7[%c2_i32_90] : memref<8x!tpu.dma_semaphore, #tpu.memory_space<semaphore_mem>> -> memref<1x!tpu.dma_semaphore, #tpu.memory_space<semaphore_mem>>
    %129 = tpu.memref_squeeze %128 : memref<1x!tpu.dma_semaphore, #tpu.memory_space<semaphore_mem>> -> memref<!tpu.dma_semaphore, #tpu.memory_space<semaphore_mem>>
    tpu.wait_dma2 semaphore(%129 : memref<!tpu.dma_semaphore, #tpu.memory_space<semaphore_mem>>) src(%125 : memref<16x128xf32, #tpu.memory_space<any>>) dst(%127 : memref<16x128xf32, #tpu.memory_space<vmem>>)
    %c8_i32_95 = arith.constant 8 : i32
    %130 = arith.muli %arg0, %c8_i32_95 : i32
    %c2_i32_96 = arith.constant 2 : i32
    %131 = arith.addi %130, %c2_i32_96 : i32
    %132 = arith.index_cast %131 : i32 to index
    %133 = memref.load %arg1[%132] : memref<8xi32, #tpu.memory_space<smem>>
    %c2_i32_97 = arith.constant 2 : i32
    %c2_i32_98 = arith.constant 2 : i32
    %c0_i32_99 = arith.constant 0 : i32
    %c0_i32_100 = arith.constant 0 : i32
    %134 = tpu.memref_slice %arg6[%c2_i32_97, %c0_i32_99, %c0_i32_100] : memref<8x16x128xf32, #tpu.memory_space<vmem>> -> memref<1x16x128xf32, #tpu.memory_space<vmem>>
    %135 = tpu.memref_squeeze %134 : memref<1x16x128xf32, #tpu.memory_space<vmem>> -> memref<16x128xf32, #tpu.memory_space<vmem>>
    %c0_i32_101 = arith.constant 0 : i32
    %c0_i32_102 = arith.constant 0 : i32
    %136 = tpu.memref_slice %arg5[%133, %c0_i32_101, %c0_i32_102] : memref<8x16x128xf32, #tpu.memory_space<any>> -> memref<1x16x128xf32, #tpu.memory_space<any>>
    %137 = tpu.memref_squeeze %136 : memref<1x16x128xf32, #tpu.memory_space<any>> -> memref<16x128xf32, #tpu.memory_space<any>>
    %138 = tpu.memref_slice %arg8[%c2_i32_98] : memref<8x!tpu.dma_semaphore, #tpu.memory_space<semaphore_mem>> -> memref<1x!tpu.dma_semaphore, #tpu.memory_space<semaphore_mem>>
    %139 = tpu.memref_squeeze %138 : memref<1x!tpu.dma_semaphore, #tpu.memory_space<semaphore_mem>> -> memref<!tpu.dma_semaphore, #tpu.memory_space<semaphore_mem>>
    tpu.enqueue_dma source(%135 : memref<16x128xf32, #tpu.memory_space<vmem>>) target(%137 : memref<16x128xf32, #tpu.memory_space<any>>) target_semaphore(%139 : memref<!tpu.dma_semaphore, #tpu.memory_space<semaphore_mem>>)
    %c8_i32_103 = arith.constant 8 : i32
    %140 = arith.muli %arg0, %c8_i32_103 : i32
    %c3_i32_104 = arith.constant 3 : i32
    %141 = arith.addi %140, %c3_i32_104 : i32
    %142 = arith.index_cast %141 : i32 to index
    %143 = memref.load %arg2[%142] : memref<8xi32, #tpu.memory_space<smem>>
    %c3_i32_105 = arith.constant 3 : i32
    %c3_i32_106 = arith.constant 3 : i32
    %c0_i32_107 = arith.constant 0 : i32
    %c0_i32_108 = arith.constant 0 : i32
    %144 = tpu.memref_slice %arg3[%143, %c0_i32_107, %c0_i32_108] : memref<8x16x128xf32, #tpu.memory_space<any>> -> memref<1x16x128xf32, #tpu.memory_space<any>>
    %145 = tpu.memref_squeeze %144 : memref<1x16x128xf32, #tpu.memory_space<any>> -> memref<16x128xf32, #tpu.memory_space<any>>
    %c0_i32_109 = arith.constant 0 : i32
    %c0_i32_110 = arith.constant 0 : i32
    %146 = tpu.memref_slice %arg6[%c3_i32_105, %c0_i32_109, %c0_i32_110] : memref<8x16x128xf32, #tpu.memory_space<vmem>> -> memref<1x16x128xf32, #tpu.memory_space<vmem>>
    %147 = tpu.memref_squeeze %146 : memref<1x16x128xf32, #tpu.memory_space<vmem>> -> memref<16x128xf32, #tpu.memory_space<vmem>>
    %148 = tpu.memref_slice %arg7[%c3_i32_106] : memref<8x!tpu.dma_semaphore, #tpu.memory_space<semaphore_mem>> -> memref<1x!tpu.dma_semaphore, #tpu.memory_space<semaphore_mem>>
    %149 = tpu.memref_squeeze %148 : memref<1x!tpu.dma_semaphore, #tpu.memory_space<semaphore_mem>> -> memref<!tpu.dma_semaphore, #tpu.memory_space<semaphore_mem>>
    tpu.wait_dma2 semaphore(%149 : memref<!tpu.dma_semaphore, #tpu.memory_space<semaphore_mem>>) src(%145 : memref<16x128xf32, #tpu.memory_space<any>>) dst(%147 : memref<16x128xf32, #tpu.memory_space<vmem>>)
    %c8_i32_111 = arith.constant 8 : i32
    %150 = arith.muli %arg0, %c8_i32_111 : i32
    %c3_i32_112 = arith.constant 3 : i32
    %151 = arith.addi %150, %c3_i32_112 : i32
    %152 = arith.index_cast %151 : i32 to index
    %153 = memref.load %arg1[%152] : memref<8xi32, #tpu.memory_space<smem>>
    %c3_i32_113 = arith.constant 3 : i32
    %c3_i32_114 = arith.constant 3 : i32
    %c0_i32_115 = arith.constant 0 : i32
    %c0_i32_116 = arith.constant 0 : i32
    %154 = tpu.memref_slice %arg6[%c3_i32_113, %c0_i32_115, %c0_i32_116] : memref<8x16x128xf32, #tpu.memory_space<vmem>> -> memref<1x16x128xf32, #tpu.memory_space<vmem>>
    %155 = tpu.memref_squeeze %154 : memref<1x16x128xf32, #tpu.memory_space<vmem>> -> memref<16x128xf32, #tpu.memory_space<vmem>>
    %c0_i32_117 = arith.constant 0 : i32
    %c0_i32_118 = arith.constant 0 : i32
    %156 = tpu.memref_slice %arg5[%153, %c0_i32_117, %c0_i32_118] : memref<8x16x128xf32, #tpu.memory_space<any>> -> memref<1x16x128xf32, #tpu.memory_space<any>>
    %157 = tpu.memref_squeeze %156 : memref<1x16x128xf32, #tpu.memory_space<any>> -> memref<16x128xf32, #tpu.memory_space<any>>
    %158 = tpu.memref_slice %arg8[%c3_i32_114] : memref<8x!tpu.dma_semaphore, #tpu.memory_space<semaphore_mem>> -> memref<1x!tpu.dma_semaphore, #tpu.memory_space<semaphore_mem>>
    %159 = tpu.memref_squeeze %158 : memref<1x!tpu.dma_semaphore, #tpu.memory_space<semaphore_mem>> -> memref<!tpu.dma_semaphore, #tpu.memory_space<semaphore_mem>>
    tpu.enqueue_dma source(%155 : memref<16x128xf32, #tpu.memory_space<vmem>>) target(%157 : memref<16x128xf32, #tpu.memory_space<any>>) target_semaphore(%159 : memref<!tpu.dma_semaphore, #tpu.memory_space<semaphore_mem>>)
    %c8_i32_119 = arith.constant 8 : i32
    %160 = arith.muli %arg0, %c8_i32_119 : i32
    %c4_i32_120 = arith.constant 4 : i32
    %161 = arith.addi %160, %c4_i32_120 : i32
    %162 = arith.index_cast %161 : i32 to index
    %163 = memref.load %arg2[%162] : memref<8xi32, #tpu.memory_space<smem>>
    %c4_i32_121 = arith.constant 4 : i32
    %c4_i32_122 = arith.constant 4 : i32
    %c0_i32_123 = arith.constant 0 : i32
    %c0_i32_124 = arith.constant 0 : i32
    %164 = tpu.memref_slice %arg3[%163, %c0_i32_123, %c0_i32_124] : memref<8x16x128xf32, #tpu.memory_space<any>> -> memref<1x16x128xf32, #tpu.memory_space<any>>
    %165 = tpu.memref_squeeze %164 : memref<1x16x128xf32, #tpu.memory_space<any>> -> memref<16x128xf32, #tpu.memory_space<any>>
    %c0_i32_125 = arith.constant 0 : i32
    %c0_i32_126 = arith.constant 0 : i32
    %166 = tpu.memref_slice %arg6[%c4_i32_121, %c0_i32_125, %c0_i32_126] : memref<8x16x128xf32, #tpu.memory_space<vmem>> -> memref<1x16x128xf32, #tpu.memory_space<vmem>>
    %167 = tpu.memref_squeeze %166 : memref<1x16x128xf32, #tpu.memory_space<vmem>> -> memref<16x128xf32, #tpu.memory_space<vmem>>
    %168 = tpu.memref_slice %arg7[%c4_i32_122] : memref<8x!tpu.dma_semaphore, #tpu.memory_space<semaphore_mem>> -> memref<1x!tpu.dma_semaphore, #tpu.memory_space<semaphore_mem>>
    %169 = tpu.memref_squeeze %168 : memref<1x!tpu.dma_semaphore, #tpu.memory_space<semaphore_mem>> -> memref<!tpu.dma_semaphore, #tpu.memory_space<semaphore_mem>>
    tpu.wait_dma2 semaphore(%169 : memref<!tpu.dma_semaphore, #tpu.memory_space<semaphore_mem>>) src(%165 : memref<16x128xf32, #tpu.memory_space<any>>) dst(%167 : memref<16x128xf32, #tpu.memory_space<vmem>>)
    %c8_i32_127 = arith.constant 8 : i32
    %170 = arith.muli %arg0, %c8_i32_127 : i32
    %c4_i32_128 = arith.constant 4 : i32
    %171 = arith.addi %170, %c4_i32_128 : i32
    %172 = arith.index_cast %171 : i32 to index
    %173 = memref.load %arg1[%172] : memref<8xi32, #tpu.memory_space<smem>>
    %c4_i32_129 = arith.constant 4 : i32
    %c4_i32_130 = arith.constant 4 : i32
    %c0_i32_131 = arith.constant 0 : i32
    %c0_i32_132 = arith.constant 0 : i32
    %174 = tpu.memref_slice %arg6[%c4_i32_129, %c0_i32_131, %c0_i32_132] : memref<8x16x128xf32, #tpu.memory_space<vmem>> -> memref<1x16x128xf32, #tpu.memory_space<vmem>>
    %175 = tpu.memref_squeeze %174 : memref<1x16x128xf32, #tpu.memory_space<vmem>> -> memref<16x128xf32, #tpu.memory_space<vmem>>
    %c0_i32_133 = arith.constant 0 : i32
    %c0_i32_134 = arith.constant 0 : i32
    %176 = tpu.memref_slice %arg5[%173, %c0_i32_133, %c0_i32_134] : memref<8x16x128xf32, #tpu.memory_space<any>> -> memref<1x16x128xf32, #tpu.memory_space<any>>
    %177 = tpu.memref_squeeze %176 : memref<1x16x128xf32, #tpu.memory_space<any>> -> memref<16x128xf32, #tpu.memory_space<any>>
    %178 = tpu.memref_slice %arg8[%c4_i32_130] : memref<8x!tpu.dma_semaphore, #tpu.memory_space<semaphore_mem>> -> memref<1x!tpu.dma_semaphore, #tpu.memory_space<semaphore_mem>>
    %179 = tpu.memref_squeeze %178 : memref<1x!tpu.dma_semaphore, #tpu.memory_space<semaphore_mem>> -> memref<!tpu.dma_semaphore, #tpu.memory_space<semaphore_mem>>
    tpu.enqueue_dma source(%175 : memref<16x128xf32, #tpu.memory_space<vmem>>) target(%177 : memref<16x128xf32, #tpu.memory_space<any>>) target_semaphore(%179 : memref<!tpu.dma_semaphore, #tpu.memory_space<semaphore_mem>>)
    %c8_i32_135 = arith.constant 8 : i32
    %180 = arith.muli %arg0, %c8_i32_135 : i32
    %c5_i32_136 = arith.constant 5 : i32
    %181 = arith.addi %180, %c5_i32_136 : i32
    %182 = arith.index_cast %181 : i32 to index
    %183 = memref.load %arg2[%182] : memref<8xi32, #tpu.memory_space<smem>>
    %c5_i32_137 = arith.constant 5 : i32
    %c5_i32_138 = arith.constant 5 : i32
    %c0_i32_139 = arith.constant 0 : i32
    %c0_i32_140 = arith.constant 0 : i32
    %184 = tpu.memref_slice %arg3[%183, %c0_i32_139, %c0_i32_140] : memref<8x16x128xf32, #tpu.memory_space<any>> -> memref<1x16x128xf32, #tpu.memory_space<any>>
    %185 = tpu.memref_squeeze %184 : memref<1x16x128xf32, #tpu.memory_space<any>> -> memref<16x128xf32, #tpu.memory_space<any>>
    %c0_i32_141 = arith.constant 0 : i32
    %c0_i32_142 = arith.constant 0 : i32
    %186 = tpu.memref_slice %arg6[%c5_i32_137, %c0_i32_141, %c0_i32_142] : memref<8x16x128xf32, #tpu.memory_space<vmem>> -> memref<1x16x128xf32, #tpu.memory_space<vmem>>
    %187 = tpu.memref_squeeze %186 : memref<1x16x128xf32, #tpu.memory_space<vmem>> -> memref<16x128xf32, #tpu.memory_space<vmem>>
    %188 = tpu.memref_slice %arg7[%c5_i32_138] : memref<8x!tpu.dma_semaphore, #tpu.memory_space<semaphore_mem>> -> memref<1x!tpu.dma_semaphore, #tpu.memory_space<semaphore_mem>>
    %189 = tpu.memref_squeeze %188 : memref<1x!tpu.dma_semaphore, #tpu.memory_space<semaphore_mem>> -> memref<!tpu.dma_semaphore, #tpu.memory_space<semaphore_mem>>
    tpu.wait_dma2 semaphore(%189 : memref<!tpu.dma_semaphore, #tpu.memory_space<semaphore_mem>>) src(%185 : memref<16x128xf32, #tpu.memory_space<any>>) dst(%187 : memref<16x128xf32, #tpu.memory_space<vmem>>)
    %c8_i32_143 = arith.constant 8 : i32
    %190 = arith.muli %arg0, %c8_i32_143 : i32
    %c5_i32_144 = arith.constant 5 : i32
    %191 = arith.addi %190, %c5_i32_144 : i32
    %192 = arith.index_cast %191 : i32 to index
    %193 = memref.load %arg1[%192] : memref<8xi32, #tpu.memory_space<smem>>
    %c5_i32_145 = arith.constant 5 : i32
    %c5_i32_146 = arith.constant 5 : i32
    %c0_i32_147 = arith.constant 0 : i32
    %c0_i32_148 = arith.constant 0 : i32
    %194 = tpu.memref_slice %arg6[%c5_i32_145, %c0_i32_147, %c0_i32_148] : memref<8x16x128xf32, #tpu.memory_space<vmem>> -> memref<1x16x128xf32, #tpu.memory_space<vmem>>
    %195 = tpu.memref_squeeze %194 : memref<1x16x128xf32, #tpu.memory_space<vmem>> -> memref<16x128xf32, #tpu.memory_space<vmem>>
    %c0_i32_149 = arith.constant 0 : i32
    %c0_i32_150 = arith.constant 0 : i32
    %196 = tpu.memref_slice %arg5[%193, %c0_i32_149, %c0_i32_150] : memref<8x16x128xf32, #tpu.memory_space<any>> -> memref<1x16x128xf32, #tpu.memory_space<any>>
    %197 = tpu.memref_squeeze %196 : memref<1x16x128xf32, #tpu.memory_space<any>> -> memref<16x128xf32, #tpu.memory_space<any>>
    %198 = tpu.memref_slice %arg8[%c5_i32_146] : memref<8x!tpu.dma_semaphore, #tpu.memory_space<semaphore_mem>> -> memref<1x!tpu.dma_semaphore, #tpu.memory_space<semaphore_mem>>
    %199 = tpu.memref_squeeze %198 : memref<1x!tpu.dma_semaphore, #tpu.memory_space<semaphore_mem>> -> memref<!tpu.dma_semaphore, #tpu.memory_space<semaphore_mem>>
    tpu.enqueue_dma source(%195 : memref<16x128xf32, #tpu.memory_space<vmem>>) target(%197 : memref<16x128xf32, #tpu.memory_space<any>>) target_semaphore(%199 : memref<!tpu.dma_semaphore, #tpu.memory_space<semaphore_mem>>)
    %c8_i32_151 = arith.constant 8 : i32
    %200 = arith.muli %arg0, %c8_i32_151 : i32
    %c6_i32_152 = arith.constant 6 : i32
    %201 = arith.addi %200, %c6_i32_152 : i32
    %202 = arith.index_cast %201 : i32 to index
    %203 = memref.load %arg2[%202] : memref<8xi32, #tpu.memory_space<smem>>
    %c6_i32_153 = arith.constant 6 : i32
    %c6_i32_154 = arith.constant 6 : i32
    %c0_i32_155 = arith.constant 0 : i32
    %c0_i32_156 = arith.constant 0 : i32
    %204 = tpu.memref_slice %arg3[%203, %c0_i32_155, %c0_i32_156] : memref<8x16x128xf32, #tpu.memory_space<any>> -> memref<1x16x128xf32, #tpu.memory_space<any>>
    %205 = tpu.memref_squeeze %204 : memref<1x16x128xf32, #tpu.memory_space<any>> -> memref<16x128xf32, #tpu.memory_space<any>>
    %c0_i32_157 = arith.constant 0 : i32
    %c0_i32_158 = arith.constant 0 : i32
    %206 = tpu.memref_slice %arg6[%c6_i32_153, %c0_i32_157, %c0_i32_158] : memref<8x16x128xf32, #tpu.memory_space<vmem>> -> memref<1x16x128xf32, #tpu.memory_space<vmem>>
    %207 = tpu.memref_squeeze %206 : memref<1x16x128xf32, #tpu.memory_space<vmem>> -> memref<16x128xf32, #tpu.memory_space<vmem>>
    %208 = tpu.memref_slice %arg7[%c6_i32_154] : memref<8x!tpu.dma_semaphore, #tpu.memory_space<semaphore_mem>> -> memref<1x!tpu.dma_semaphore, #tpu.memory_space<semaphore_mem>>
    %209 = tpu.memref_squeeze %208 : memref<1x!tpu.dma_semaphore, #tpu.memory_space<semaphore_mem>> -> memref<!tpu.dma_semaphore, #tpu.memory_space<semaphore_mem>>
    tpu.wait_dma2 semaphore(%209 : memref<!tpu.dma_semaphore, #tpu.memory_space<semaphore_mem>>) src(%205 : memref<16x128xf32, #tpu.memory_space<any>>) dst(%207 : memref<16x128xf32, #tpu.memory_space<vmem>>)
    %c8_i32_159 = arith.constant 8 : i32
    %210 = arith.muli %arg0, %c8_i32_159 : i32
    %c6_i32_160 = arith.constant 6 : i32
    %211 = arith.addi %210, %c6_i32_160 : i32
    %212 = arith.index_cast %211 : i32 to index
    %213 = memref.load %arg1[%212] : memref<8xi32, #tpu.memory_space<smem>>
    %c6_i32_161 = arith.constant 6 : i32
    %c6_i32_162 = arith.constant 6 : i32
    %c0_i32_163 = arith.constant 0 : i32
    %c0_i32_164 = arith.constant 0 : i32
    %214 = tpu.memref_slice %arg6[%c6_i32_161, %c0_i32_163, %c0_i32_164] : memref<8x16x128xf32, #tpu.memory_space<vmem>> -> memref<1x16x128xf32, #tpu.memory_space<vmem>>
    %215 = tpu.memref_squeeze %214 : memref<1x16x128xf32, #tpu.memory_space<vmem>> -> memref<16x128xf32, #tpu.memory_space<vmem>>
    %c0_i32_165 = arith.constant 0 : i32
    %c0_i32_166 = arith.constant 0 : i32
    %216 = tpu.memref_slice %arg5[%213, %c0_i32_165, %c0_i32_166] : memref<8x16x128xf32, #tpu.memory_space<any>> -> memref<1x16x128xf32, #tpu.memory_space<any>>
    %217 = tpu.memref_squeeze %216 : memref<1x16x128xf32, #tpu.memory_space<any>> -> memref<16x128xf32, #tpu.memory_space<any>>
    %218 = tpu.memref_slice %arg8[%c6_i32_162] : memref<8x!tpu.dma_semaphore, #tpu.memory_space<semaphore_mem>> -> memref<1x!tpu.dma_semaphore, #tpu.memory_space<semaphore_mem>>
    %219 = tpu.memref_squeeze %218 : memref<1x!tpu.dma_semaphore, #tpu.memory_space<semaphore_mem>> -> memref<!tpu.dma_semaphore, #tpu.memory_space<semaphore_mem>>
    tpu.enqueue_dma source(%215 : memref<16x128xf32, #tpu.memory_space<vmem>>) target(%217 : memref<16x128xf32, #tpu.memory_space<any>>) target_semaphore(%219 : memref<!tpu.dma_semaphore, #tpu.memory_space<semaphore_mem>>)
    %c8_i32_167 = arith.constant 8 : i32
    %220 = arith.muli %arg0, %c8_i32_167 : i32
    %c7_i32_168 = arith.constant 7 : i32
    %221 = arith.addi %220, %c7_i32_168 : i32
    %222 = arith.index_cast %221 : i32 to index
    %223 = memref.load %arg2[%222] : memref<8xi32, #tpu.memory_space<smem>>
    %c7_i32_169 = arith.constant 7 : i32
    %c7_i32_170 = arith.constant 7 : i32
    %c0_i32_171 = arith.constant 0 : i32
    %c0_i32_172 = arith.constant 0 : i32
    %224 = tpu.memref_slice %arg3[%223, %c0_i32_171, %c0_i32_172] : memref<8x16x128xf32, #tpu.memory_space<any>> -> memref<1x16x128xf32, #tpu.memory_space<any>>
    %225 = tpu.memref_squeeze %224 : memref<1x16x128xf32, #tpu.memory_space<any>> -> memref<16x128xf32, #tpu.memory_space<any>>
    %c0_i32_173 = arith.constant 0 : i32
    %c0_i32_174 = arith.constant 0 : i32
    %226 = tpu.memref_slice %arg6[%c7_i32_169, %c0_i32_173, %c0_i32_174] : memref<8x16x128xf32, #tpu.memory_space<vmem>> -> memref<1x16x128xf32, #tpu.memory_space<vmem>>
    %227 = tpu.memref_squeeze %226 : memref<1x16x128xf32, #tpu.memory_space<vmem>> -> memref<16x128xf32, #tpu.memory_space<vmem>>
    %228 = tpu.memref_slice %arg7[%c7_i32_170] : memref<8x!tpu.dma_semaphore, #tpu.memory_space<semaphore_mem>> -> memref<1x!tpu.dma_semaphore, #tpu.memory_space<semaphore_mem>>
    %229 = tpu.memref_squeeze %228 : memref<1x!tpu.dma_semaphore, #tpu.memory_space<semaphore_mem>> -> memref<!tpu.dma_semaphore, #tpu.memory_space<semaphore_mem>>
    tpu.wait_dma2 semaphore(%229 : memref<!tpu.dma_semaphore, #tpu.memory_space<semaphore_mem>>) src(%225 : memref<16x128xf32, #tpu.memory_space<any>>) dst(%227 : memref<16x128xf32, #tpu.memory_space<vmem>>)
    %c8_i32_175 = arith.constant 8 : i32
    %230 = arith.muli %arg0, %c8_i32_175 : i32
    %c7_i32_176 = arith.constant 7 : i32
    %231 = arith.addi %230, %c7_i32_176 : i32
    %232 = arith.index_cast %231 : i32 to index
    %233 = memref.load %arg1[%232] : memref<8xi32, #tpu.memory_space<smem>>
    %c7_i32_177 = arith.constant 7 : i32
    %c7_i32_178 = arith.constant 7 : i32
    %c0_i32_179 = arith.constant 0 : i32
    %c0_i32_180 = arith.constant 0 : i32
    %234 = tpu.memref_slice %arg6[%c7_i32_177, %c0_i32_179, %c0_i32_180] : memref<8x16x128xf32, #tpu.memory_space<vmem>> -> memref<1x16x128xf32, #tpu.memory_space<vmem>>
    %235 = tpu.memref_squeeze %234 : memref<1x16x128xf32, #tpu.memory_space<vmem>> -> memref<16x128xf32, #tpu.memory_space<vmem>>
    %c0_i32_181 = arith.constant 0 : i32
    %c0_i32_182 = arith.constant 0 : i32
    %236 = tpu.memref_slice %arg5[%233, %c0_i32_181, %c0_i32_182] : memref<8x16x128xf32, #tpu.memory_space<any>> -> memref<1x16x128xf32, #tpu.memory_space<any>>
    %237 = tpu.memref_squeeze %236 : memref<1x16x128xf32, #tpu.memory_space<any>> -> memref<16x128xf32, #tpu.memory_space<any>>
    %238 = tpu.memref_slice %arg8[%c7_i32_178] : memref<8x!tpu.dma_semaphore, #tpu.memory_space<semaphore_mem>> -> memref<1x!tpu.dma_semaphore, #tpu.memory_space<semaphore_mem>>
    %239 = tpu.memref_squeeze %238 : memref<1x!tpu.dma_semaphore, #tpu.memory_space<semaphore_mem>> -> memref<!tpu.dma_semaphore, #tpu.memory_space<semaphore_mem>>
    tpu.enqueue_dma source(%235 : memref<16x128xf32, #tpu.memory_space<vmem>>) target(%237 : memref<16x128xf32, #tpu.memory_space<any>>) target_semaphore(%239 : memref<!tpu.dma_semaphore, #tpu.memory_space<semaphore_mem>>)
    %c8_i32_183 = arith.constant 8 : i32
    %240 = arith.muli %arg0, %c8_i32_183 : i32
    %c0_i32_184 = arith.constant 0 : i32
    %241 = arith.addi %240, %c0_i32_184 : i32
    %242 = arith.index_cast %241 : i32 to index
    %243 = memref.load %arg1[%242] : memref<8xi32, #tpu.memory_space<smem>>
    %c0_i32_185 = arith.constant 0 : i32
    %c0_i32_186 = arith.constant 0 : i32
    %c0_i32_187 = arith.constant 0 : i32
    %c0_i32_188 = arith.constant 0 : i32
    %244 = tpu.memref_slice %arg6[%c0_i32_185, %c0_i32_187, %c0_i32_188] : memref<8x16x128xf32, #tpu.memory_space<vmem>> -> memref<1x16x128xf32, #tpu.memory_space<vmem>>
    %245 = tpu.memref_squeeze %244 : memref<1x16x128xf32, #tpu.memory_space<vmem>> -> memref<16x128xf32, #tpu.memory_space<vmem>>
    %c0_i32_189 = arith.constant 0 : i32
    %c0_i32_190 = arith.constant 0 : i32
    %246 = tpu.memref_slice %arg5[%243, %c0_i32_189, %c0_i32_190] : memref<8x16x128xf32, #tpu.memory_space<any>> -> memref<1x16x128xf32, #tpu.memory_space<any>>
    %247 = tpu.memref_squeeze %246 : memref<1x16x128xf32, #tpu.memory_space<any>> -> memref<16x128xf32, #tpu.memory_space<any>>
    %248 = tpu.memref_slice %arg8[%c0_i32_186] : memref<8x!tpu.dma_semaphore, #tpu.memory_space<semaphore_mem>> -> memref<1x!tpu.dma_semaphore, #tpu.memory_space<semaphore_mem>>
    %249 = tpu.memref_squeeze %248 : memref<1x!tpu.dma_semaphore, #tpu.memory_space<semaphore_mem>> -> memref<!tpu.dma_semaphore, #tpu.memory_space<semaphore_mem>>
    tpu.wait_dma2 semaphore(%249 : memref<!tpu.dma_semaphore, #tpu.memory_space<semaphore_mem>>) src(%245 : memref<16x128xf32, #tpu.memory_space<vmem>>) dst(%247 : memref<16x128xf32, #tpu.memory_space<any>>)
    %c8_i32_191 = arith.constant 8 : i32
    %250 = arith.muli %arg0, %c8_i32_191 : i32
    %c1_i32_192 = arith.constant 1 : i32
    %251 = arith.addi %250, %c1_i32_192 : i32
    %252 = arith.index_cast %251 : i32 to index
    %253 = memref.load %arg1[%252] : memref<8xi32, #tpu.memory_space<smem>>
    %c1_i32_193 = arith.constant 1 : i32
    %c1_i32_194 = arith.constant 1 : i32
    %c0_i32_195 = arith.constant 0 : i32
    %c0_i32_196 = arith.constant 0 : i32
    %254 = tpu.memref_slice %arg6[%c1_i32_193, %c0_i32_195, %c0_i32_196] : memref<8x16x128xf32, #tpu.memory_space<vmem>> -> memref<1x16x128xf32, #tpu.memory_space<vmem>>
    %255 = tpu.memref_squeeze %254 : memref<1x16x128xf32, #tpu.memory_space<vmem>> -> memref<16x128xf32, #tpu.memory_space<vmem>>
    %c0_i32_197 = arith.constant 0 : i32
    %c0_i32_198 = arith.constant 0 : i32
    %256 = tpu.memref_slice %arg5[%253, %c0_i32_197, %c0_i32_198] : memref<8x16x128xf32, #tpu.memory_space<any>> -> memref<1x16x128xf32, #tpu.memory_space<any>>
    %257 = tpu.memref_squeeze %256 : memref<1x16x128xf32, #tpu.memory_space<any>> -> memref<16x128xf32, #tpu.memory_space<any>>
    %258 = tpu.memref_slice %arg8[%c1_i32_194] : memref<8x!tpu.dma_semaphore, #tpu.memory_space<semaphore_mem>> -> memref<1x!tpu.dma_semaphore, #tpu.memory_space<semaphore_mem>>
    %259 = tpu.memref_squeeze %258 : memref<1x!tpu.dma_semaphore, #tpu.memory_space<semaphore_mem>> -> memref<!tpu.dma_semaphore, #tpu.memory_space<semaphore_mem>>
    tpu.wait_dma2 semaphore(%259 : memref<!tpu.dma_semaphore, #tpu.memory_space<semaphore_mem>>) src(%255 : memref<16x128xf32, #tpu.memory_space<vmem>>) dst(%257 : memref<16x128xf32, #tpu.memory_space<any>>)
    %c8_i32_199 = arith.constant 8 : i32
    %260 = arith.muli %arg0, %c8_i32_199 : i32
    %c2_i32_200 = arith.constant 2 : i32
    %261 = arith.addi %260, %c2_i32_200 : i32
    %262 = arith.index_cast %261 : i32 to index
    %263 = memref.load %arg1[%262] : memref<8xi32, #tpu.memory_space<smem>>
    %c2_i32_201 = arith.constant 2 : i32
    %c2_i32_202 = arith.constant 2 : i32
    %c0_i32_203 = arith.constant 0 : i32
    %c0_i32_204 = arith.constant 0 : i32
    %264 = tpu.memref_slice %arg6[%c2_i32_201, %c0_i32_203, %c0_i32_204] : memref<8x16x128xf32, #tpu.memory_space<vmem>> -> memref<1x16x128xf32, #tpu.memory_space<vmem>>
    %265 = tpu.memref_squeeze %264 : memref<1x16x128xf32, #tpu.memory_space<vmem>> -> memref<16x128xf32, #tpu.memory_space<vmem>>
    %c0_i32_205 = arith.constant 0 : i32
    %c0_i32_206 = arith.constant 0 : i32
    %266 = tpu.memref_slice %arg5[%263, %c0_i32_205, %c0_i32_206] : memref<8x16x128xf32, #tpu.memory_space<any>> -> memref<1x16x128xf32, #tpu.memory_space<any>>
    %267 = tpu.memref_squeeze %266 : memref<1x16x128xf32, #tpu.memory_space<any>> -> memref<16x128xf32, #tpu.memory_space<any>>
    %268 = tpu.memref_slice %arg8[%c2_i32_202] : memref<8x!tpu.dma_semaphore, #tpu.memory_space<semaphore_mem>> -> memref<1x!tpu.dma_semaphore, #tpu.memory_space<semaphore_mem>>
    %269 = tpu.memref_squeeze %268 : memref<1x!tpu.dma_semaphore, #tpu.memory_space<semaphore_mem>> -> memref<!tpu.dma_semaphore, #tpu.memory_space<semaphore_mem>>
    tpu.wait_dma2 semaphore(%269 : memref<!tpu.dma_semaphore, #tpu.memory_space<semaphore_mem>>) src(%265 : memref<16x128xf32, #tpu.memory_space<vmem>>) dst(%267 : memref<16x128xf32, #tpu.memory_space<any>>)
    %c8_i32_207 = arith.constant 8 : i32
    %270 = arith.muli %arg0, %c8_i32_207 : i32
    %c3_i32_208 = arith.constant 3 : i32
    %271 = arith.addi %270, %c3_i32_208 : i32
    %272 = arith.index_cast %271 : i32 to index
    %273 = memref.load %arg1[%272] : memref<8xi32, #tpu.memory_space<smem>>
    %c3_i32_209 = arith.constant 3 : i32
    %c3_i32_210 = arith.constant 3 : i32
    %c0_i32_211 = arith.constant 0 : i32
    %c0_i32_212 = arith.constant 0 : i32
    %274 = tpu.memref_slice %arg6[%c3_i32_209, %c0_i32_211, %c0_i32_212] : memref<8x16x128xf32, #tpu.memory_space<vmem>> -> memref<1x16x128xf32, #tpu.memory_space<vmem>>
    %275 = tpu.memref_squeeze %274 : memref<1x16x128xf32, #tpu.memory_space<vmem>> -> memref<16x128xf32, #tpu.memory_space<vmem>>
    %c0_i32_213 = arith.constant 0 : i32
    %c0_i32_214 = arith.constant 0 : i32
    %276 = tpu.memref_slice %arg5[%273, %c0_i32_213, %c0_i32_214] : memref<8x16x128xf32, #tpu.memory_space<any>> -> memref<1x16x128xf32, #tpu.memory_space<any>>
    %277 = tpu.memref_squeeze %276 : memref<1x16x128xf32, #tpu.memory_space<any>> -> memref<16x128xf32, #tpu.memory_space<any>>
    %278 = tpu.memref_slice %arg8[%c3_i32_210] : memref<8x!tpu.dma_semaphore, #tpu.memory_space<semaphore_mem>> -> memref<1x!tpu.dma_semaphore, #tpu.memory_space<semaphore_mem>>
    %279 = tpu.memref_squeeze %278 : memref<1x!tpu.dma_semaphore, #tpu.memory_space<semaphore_mem>> -> memref<!tpu.dma_semaphore, #tpu.memory_space<semaphore_mem>>
    tpu.wait_dma2 semaphore(%279 : memref<!tpu.dma_semaphore, #tpu.memory_space<semaphore_mem>>) src(%275 : memref<16x128xf32, #tpu.memory_space<vmem>>) dst(%277 : memref<16x128xf32, #tpu.memory_space<any>>)
    %c8_i32_215 = arith.constant 8 : i32
    %280 = arith.muli %arg0, %c8_i32_215 : i32
    %c4_i32_216 = arith.constant 4 : i32
    %281 = arith.addi %280, %c4_i32_216 : i32
    %282 = arith.index_cast %281 : i32 to index
    %283 = memref.load %arg1[%282] : memref<8xi32, #tpu.memory_space<smem>>
    %c4_i32_217 = arith.constant 4 : i32
    %c4_i32_218 = arith.constant 4 : i32
    %c0_i32_219 = arith.constant 0 : i32
    %c0_i32_220 = arith.constant 0 : i32
    %284 = tpu.memref_slice %arg6[%c4_i32_217, %c0_i32_219, %c0_i32_220] : memref<8x16x128xf32, #tpu.memory_space<vmem>> -> memref<1x16x128xf32, #tpu.memory_space<vmem>>
    %285 = tpu.memref_squeeze %284 : memref<1x16x128xf32, #tpu.memory_space<vmem>> -> memref<16x128xf32, #tpu.memory_space<vmem>>
    %c0_i32_221 = arith.constant 0 : i32
    %c0_i32_222 = arith.constant 0 : i32
    %286 = tpu.memref_slice %arg5[%283, %c0_i32_221, %c0_i32_222] : memref<8x16x128xf32, #tpu.memory_space<any>> -> memref<1x16x128xf32, #tpu.memory_space<any>>
    %287 = tpu.memref_squeeze %286 : memref<1x16x128xf32, #tpu.memory_space<any>> -> memref<16x128xf32, #tpu.memory_space<any>>
    %288 = tpu.memref_slice %arg8[%c4_i32_218] : memref<8x!tpu.dma_semaphore, #tpu.memory_space<semaphore_mem>> -> memref<1x!tpu.dma_semaphore, #tpu.memory_space<semaphore_mem>>
    %289 = tpu.memref_squeeze %288 : memref<1x!tpu.dma_semaphore, #tpu.memory_space<semaphore_mem>> -> memref<!tpu.dma_semaphore, #tpu.memory_space<semaphore_mem>>
    tpu.wait_dma2 semaphore(%289 : memref<!tpu.dma_semaphore, #tpu.memory_space<semaphore_mem>>) src(%285 : memref<16x128xf32, #tpu.memory_space<vmem>>) dst(%287 : memref<16x128xf32, #tpu.memory_space<any>>)
    %c8_i32_223 = arith.constant 8 : i32
    %290 = arith.muli %arg0, %c8_i32_223 : i32
    %c5_i32_224 = arith.constant 5 : i32
    %291 = arith.addi %290, %c5_i32_224 : i32
    %292 = arith.index_cast %291 : i32 to index
    %293 = memref.load %arg1[%292] : memref<8xi32, #tpu.memory_space<smem>>
    %c5_i32_225 = arith.constant 5 : i32
    %c5_i32_226 = arith.constant 5 : i32
    %c0_i32_227 = arith.constant 0 : i32
    %c0_i32_228 = arith.constant 0 : i32
    %294 = tpu.memref_slice %arg6[%c5_i32_225, %c0_i32_227, %c0_i32_228] : memref<8x16x128xf32, #tpu.memory_space<vmem>> -> memref<1x16x128xf32, #tpu.memory_space<vmem>>
    %295 = tpu.memref_squeeze %294 : memref<1x16x128xf32, #tpu.memory_space<vmem>> -> memref<16x128xf32, #tpu.memory_space<vmem>>
    %c0_i32_229 = arith.constant 0 : i32
    %c0_i32_230 = arith.constant 0 : i32
    %296 = tpu.memref_slice %arg5[%293, %c0_i32_229, %c0_i32_230] : memref<8x16x128xf32, #tpu.memory_space<any>> -> memref<1x16x128xf32, #tpu.memory_space<any>>
    %297 = tpu.memref_squeeze %296 : memref<1x16x128xf32, #tpu.memory_space<any>> -> memref<16x128xf32, #tpu.memory_space<any>>
    %298 = tpu.memref_slice %arg8[%c5_i32_226] : memref<8x!tpu.dma_semaphore, #tpu.memory_space<semaphore_mem>> -> memref<1x!tpu.dma_semaphore, #tpu.memory_space<semaphore_mem>>
    %299 = tpu.memref_squeeze %298 : memref<1x!tpu.dma_semaphore, #tpu.memory_space<semaphore_mem>> -> memref<!tpu.dma_semaphore, #tpu.memory_space<semaphore_mem>>
    tpu.wait_dma2 semaphore(%299 : memref<!tpu.dma_semaphore, #tpu.memory_space<semaphore_mem>>) src(%295 : memref<16x128xf32, #tpu.memory_space<vmem>>) dst(%297 : memref<16x128xf32, #tpu.memory_space<any>>)
    %c8_i32_231 = arith.constant 8 : i32
    %300 = arith.muli %arg0, %c8_i32_231 : i32
    %c6_i32_232 = arith.constant 6 : i32
    %301 = arith.addi %300, %c6_i32_232 : i32
    %302 = arith.index_cast %301 : i32 to index
    %303 = memref.load %arg1[%302] : memref<8xi32, #tpu.memory_space<smem>>
    %c6_i32_233 = arith.constant 6 : i32
    %c6_i32_234 = arith.constant 6 : i32
    %c0_i32_235 = arith.constant 0 : i32
    %c0_i32_236 = arith.constant 0 : i32
    %304 = tpu.memref_slice %arg6[%c6_i32_233, %c0_i32_235, %c0_i32_236] : memref<8x16x128xf32, #tpu.memory_space<vmem>> -> memref<1x16x128xf32, #tpu.memory_space<vmem>>
    %305 = tpu.memref_squeeze %304 : memref<1x16x128xf32, #tpu.memory_space<vmem>> -> memref<16x128xf32, #tpu.memory_space<vmem>>
    %c0_i32_237 = arith.constant 0 : i32
    %c0_i32_238 = arith.constant 0 : i32
    %306 = tpu.memref_slice %arg5[%303, %c0_i32_237, %c0_i32_238] : memref<8x16x128xf32, #tpu.memory_space<any>> -> memref<1x16x128xf32, #tpu.memory_space<any>>
    %307 = tpu.memref_squeeze %306 : memref<1x16x128xf32, #tpu.memory_space<any>> -> memref<16x128xf32, #tpu.memory_space<any>>
    %308 = tpu.memref_slice %arg8[%c6_i32_234] : memref<8x!tpu.dma_semaphore, #tpu.memory_space<semaphore_mem>> -> memref<1x!tpu.dma_semaphore, #tpu.memory_space<semaphore_mem>>
    %309 = tpu.memref_squeeze %308 : memref<1x!tpu.dma_semaphore, #tpu.memory_space<semaphore_mem>> -> memref<!tpu.dma_semaphore, #tpu.memory_space<semaphore_mem>>
    tpu.wait_dma2 semaphore(%309 : memref<!tpu.dma_semaphore, #tpu.memory_space<semaphore_mem>>) src(%305 : memref<16x128xf32, #tpu.memory_space<vmem>>) dst(%307 : memref<16x128xf32, #tpu.memory_space<any>>)
    %c8_i32_239 = arith.constant 8 : i32
    %310 = arith.muli %arg0, %c8_i32_239 : i32
    %c7_i32_240 = arith.constant 7 : i32
    %311 = arith.addi %310, %c7_i32_240 : i32
    %312 = arith.index_cast %311 : i32 to index
    %313 = memref.load %arg1[%312] : memref<8xi32, #tpu.memory_space<smem>>
    %c7_i32_241 = arith.constant 7 : i32
    %c7_i32_242 = arith.constant 7 : i32
    %c0_i32_243 = arith.constant 0 : i32
    %c0_i32_244 = arith.constant 0 : i32
    %314 = tpu.memref_slice %arg6[%c7_i32_241, %c0_i32_243, %c0_i32_244] : memref<8x16x128xf32, #tpu.memory_space<vmem>> -> memref<1x16x128xf32, #tpu.memory_space<vmem>>
    %315 = tpu.memref_squeeze %314 : memref<1x16x128xf32, #tpu.memory_space<vmem>> -> memref<16x128xf32, #tpu.memory_space<vmem>>
    %c0_i32_245 = arith.constant 0 : i32
    %c0_i32_246 = arith.constant 0 : i32
    %316 = tpu.memref_slice %arg5[%313, %c0_i32_245, %c0_i32_246] : memref<8x16x128xf32, #tpu.memory_space<any>> -> memref<1x16x128xf32, #tpu.memory_space<any>>
    %317 = tpu.memref_squeeze %316 : memref<1x16x128xf32, #tpu.memory_space<any>> -> memref<16x128xf32, #tpu.memory_space<any>>
    %318 = tpu.memref_slice %arg8[%c7_i32_242] : memref<8x!tpu.dma_semaphore, #tpu.memory_space<semaphore_mem>> -> memref<1x!tpu.dma_semaphore, #tpu.memory_space<semaphore_mem>>
    %319 = tpu.memref_squeeze %318 : memref<1x!tpu.dma_semaphore, #tpu.memory_space<semaphore_mem>> -> memref<!tpu.dma_semaphore, #tpu.memory_space<semaphore_mem>>
    tpu.wait_dma2 semaphore(%319 : memref<!tpu.dma_semaphore, #tpu.memory_space<semaphore_mem>>) src(%315 : memref<16x128xf32, #tpu.memory_space<vmem>>) dst(%317 : memref<16x128xf32, #tpu.memory_space<any>>)
    return
  }
  func.func @transform_3(%arg0: i32, %arg1: memref<8xi32, #tpu.memory_space<smem>>, %arg2: memref<8xi32, #tpu.memory_space<smem>>) -> (i32, i32, i32) {
    %c0_i32 = arith.constant 0 : i32
    %c0_i32_0 = arith.constant 0 : i32
    %c0_i32_1 = arith.constant 0 : i32
    return %arg0, %c0_i32, %c0_i32_0 : i32, i32, i32
  }
}

</mosaic_0001>

<llo_original>
// kernel: cache_set_and_gather.1
$region0: #{cache_set_and_gather.1}
  #allocation0 [shape = 'u32[]', space=smem, size = 0x4, offset = 0x4, fixed_abs, tag = 'smem constant byte address 0x4 - core index']
  #allocation1 [shape = 'u32[144,128]{1,0:T(1,128)}', space=vmem, size = 0x12000, scoped, tag = 'internal scratch']
  #allocation2 [shape = 's32[8]{0}', space=sflag, size = 0x20, scoped, tag = 'scratch operand']
  #allocation3 [shape = 's32[8]{0}', space=sflag, size = 0x20, scoped, tag = 'scratch operand']
  #allocation4 [shape = 's32[1]{0}', space=sflag, size = 0x4, scoped, tag = 'scoped memory for cache_set_and_gather.1']
  #allocation5 [shape = 'u8[512]{0}', space=smem, size = 0x200, scoped, tag = 'prefetched SMEM operand 0']
  #allocation6 [shape = 'u8[512]{0}', space=smem, size = 0x200, scoped, tag = 'prefetched SMEM operand 1']
  #allocation9 [shape = 's32[]', space=sflag, size = 0x4, offset = 0, fixed_abs, tag = 'sflag constant byte address 0x0 - dummy sync flag']
  #allocation10 [shape = 's32[]', space=sflag, size = 0x4, offset = 0, fixed_abs, tag = 'sflag constant byte address 0x0 - dummy sync flag']
  #allocation11 [shape = 's32[]', space=sflag, size = 0x4, offset = 0, fixed_abs, tag = 'sflag constant byte address 0x0 - dummy sync flag']
  #allocation12 [shape = 's32[]', space=sflag, size = 0x4, offset = 0, fixed_abs, tag = 'sflag constant byte address 0x0 - dummy sync flag']
  #allocation13 [shape = 's32[]', space=sflag, size = 0x4, offset = 0, fixed_abs, tag = 'sflag constant byte address 0x0 - dummy sync flag']
  #allocation14 [shape = 's32[]', space=sflag, size = 0x4, offset = 0, fixed_abs, tag = 'sflag constant byte address 0x0 - dummy sync flag']
  #allocation15 [shape = 's32[]', space=sflag, size = 0x4, offset = 0, fixed_abs, tag = 'sflag constant byte address 0x0 - dummy sync flag']
  #allocation16 [shape = 's32[]', space=sflag, size = 0x4, offset = 0, fixed_abs, tag = 'sflag constant byte address 0x0 - dummy sync flag']
  #allocation17 [shape = 's32[]', space=sflag, size = 0x4, offset = 0, fixed_abs, tag = 'sflag constant byte address 0x0 - dummy sync flag']
  #allocation18 [shape = 's32[]', space=sflag, size = 0x4, offset = 0, fixed_abs, tag = 'sflag constant byte address 0x0 - dummy sync flag']
  #allocation19 [shape = 'u32[]', space=smem, size = 0x4, offset = 0x44, fixed_abs, tag = 'smem constant byte address 0x44 - assertion arg 0']
  #allocation20 [shape = 'u32[]', space=smem, size = 0x4, offset = 0x48, fixed_abs, tag = 'smem constant byte address 0x48 - assertion arg 1']
  #allocation21 [shape = 's32[]', space=sflag, size = 0x4, offset = 0, fixed_abs, tag = 'sflag constant byte address 0x0 - dummy sync flag']
  #allocation22 [shape = 's32[]', space=sflag, size = 0x4, offset = 0, fixed_abs, tag = 'sflag constant byte address 0x0 - dummy sync flag']
  #allocation23 [shape = 's32[]', space=sflag, size = 0x4, offset = 0, fixed_abs, tag = 'sflag constant byte address 0x0 - dummy sync flag']
  #allocation24 [shape = 's32[]', space=sflag, size = 0x4, offset = 0, fixed_abs, tag = 'sflag constant byte address 0x0 - dummy sync flag']
  #allocation25 [shape = 's32[]', space=sflag, size = 0x4, offset = 0, fixed_abs, tag = 'sflag constant byte address 0x0 - dummy sync flag']
  #allocation26 [shape = 's32[]', space=sflag, size = 0x4, offset = 0, fixed_abs, tag = 'sflag constant byte address 0x0 - dummy sync flag']
  #allocation27 [shape = 's32[]', space=sflag, size = 0x4, offset = 0, fixed_abs, tag = 'sflag constant byte address 0x0 - dummy sync flag']
  #allocation28 [shape = 's32[]', space=sflag, size = 0x4, offset = 0, fixed_abs, tag = 'sflag constant byte address 0x0 - dummy sync flag']
  #allocation29 [shape = 's32[]', space=sflag, size = 0x4, offset = 0, fixed_abs, tag = 'sflag constant byte address 0x0 - dummy sync flag']
  #allocation30 [shape = 's32[]', space=sflag, size = 0x4, offset = 0, fixed_abs, tag = 'sflag constant byte address 0x0 - dummy sync flag']
  #allocation31 [shape = 's32[]', space=sflag, size = 0x4, offset = 0, fixed_abs, tag = 'sflag constant byte address 0x0 - dummy sync flag']
  #allocation32 [shape = 's32[]', space=sflag, size = 0x4, offset = 0, fixed_abs, tag = 'sflag constant byte address 0x0 - dummy sync flag']
  #allocation33 [shape = 's32[]', space=sflag, size = 0x4, offset = 0, fixed_abs, tag = 'sflag constant byte address 0x0 - dummy sync flag']
  #allocation34 [shape = 's32[]', space=sflag, size = 0x4, offset = 0, fixed_abs, tag = 'sflag constant byte address 0x0 - dummy sync flag']
  %s0 = inlined_call_operand.vmem [shape: s32[8], index: 0, kind: input, shape index: {}]
  %s1 = inlined_call_operand.vmem [shape: s32[8], index: 1, kind: input, shape index: {}]
  %s2 = inlined_call_operand.vmem [shape: f32[8,16,128], index: 2, kind: input, shape index: {}]
  %s3 = inlined_call_operand.hbm [shape: f32[8,16,128], index: 3, kind: input, shape index: {}, may-alias: {3,4}]
  %s4 = inlined_call_operand.hbm [shape: f32[8,16,128], index: 4, kind: output, shape index: {0}, may-alias: {3,4}]
  %s5 = inlined_call_operand.hbm [shape: f32[8,16,128], index: 5, kind: output, shape index: {1}]
  %6 = xla_tuple %s4, %s5
  %s7 = sld [smem:[#allocation0]]
  $region314: #{cache_set_and_gather.1} parent=0
    _
  %s9 = ssub.s32 1, %s7
  %s10 = scalar_select 0, %s9, %s7
  %s11 = sshll.u32 %s0, 4
  %s12 = int_to_ptr.vmem [resolvable:$true] %s11
  %14 = dma.vmem_to_smem %s12, 16, [#allocation5], [#allocation4]
  %s15 = sshll.u32 %s1, 4
  %s16 = int_to_ptr.vmem [resolvable:$true] %s15
  %18 = dma.vmem_to_smem %s16, 16, [#allocation6], [#allocation4]
  %19 = dma.done [#allocation4], 32
  %20 = sfence
  $region1: #{cache_set_and_gather.1} parent=0
    #allocation7 [shape = 'u8[65536]{0}', space=vmem, size = 0x10000, scoped, tag = 'output window, operand 1, single buffered']
    #allocation8 [shape = 's32[1]{0}', space=sflag, size = 0x4, scoped, tag = 'scoped memory for cache_set_and_gather.1']
    %21 = vsyncpa [#allocation8], 0
    %s22 = smul.u32 0, 8
    %s23 = sld [smem:[#allocation6 + %s22]]
    %s24 = smul.u32 %s23, 16
    %s25 = scalar_lea.vmem %s2, %s24
    %p27 = scmp.lt.u32.totalorder 16, 8
    %p28 = pneg %p27
    // Predicated region
    $region2: #{cache_set_and_gather.1} parent=1 // pred_check
      _
    $region3: #{cache_set_and_gather.1} parent=1 // pred_check_branch
      %30 = sbr.rel (%p27) target = $region5
    $region4: #{cache_set_and_gather.1} parent=1 // pred_region
      %s45 = sand.u32 16, 7
      %p46 = scmp.eq.s32.totalorder %s45, 0
      // Predicated region
      $region17: #{cache_set_and_gather.1} parent=4 // pred_check
        %p47 = pneg %p46
      $region18: #{cache_set_and_gather.1} parent=4 // pred_check_branch
        %49 = sbr.rel (%p47) target = $region20
      $region19: #{cache_set_and_gather.1} parent=4 // pred_region
        loop: start=0, step=1, limit=1
        $region21: #{cache_set_and_gather.1} parent=19 // loop_pre_header
          _
        $region22: #{cache_set_and_gather.1} parent=19 // loop_header
          %s51 = sphi 0, %s55
          %p52 = scmp.ge.s32.totalorder %s51, 1
          %s56 = sphi %s25, %s25
          %s57 = sphi [#allocation7], [#allocation7]
        $region23: #{cache_set_and_gather.1} parent=19 // loop_header_branch
          %54 = sbr.rel (%p52) target = $region27
        $region24: #{cache_set_and_gather.1} parent=19 // loop_body
          %v58 = vld [vmem:[%s56] sm:$0xff]
          %59 = vst [vmem:[%s57] sm:$0xff] %v58
          %v60 = vld [vmem:[%s56 + $0x8] sm:$0xff]
          %61 = vst [vmem:[%s57 + $0x8] sm:$0xff] %v60
        $region25: #{cache_set_and_gather.1} parent=19 // loop_footer
          %s55 = sadd.s32 1, %s51
        $region26: #{cache_set_and_gather.1} parent=19 // loop_footer_branch
          %50 = sbr.rel target = $region22
        $region27: #{cache_set_and_gather.1} parent=19 // loop_exit
          _
      $region20: #{cache_set_and_gather.1} parent=4 // pred_fallthru
        _
      %p62 = pneg %p46
      // Predicated region
      $region28: #{cache_set_and_gather.1} parent=4 // pred_check
        _
      $region29: #{cache_set_and_gather.1} parent=4 // pred_check_branch
        %64 = sbr.rel (%p46) target = $region31
      $region30: #{cache_set_and_gather.1} parent=4 // pred_region
        %s65 = sand.u32 16, 7
      $region31: #{cache_set_and_gather.1} parent=4 // pred_fallthru
        _
    $region5: #{cache_set_and_gather.1} parent=1 // pred_fallthru
      _
    // Predicated region
    $region6: #{cache_set_and_gather.1} parent=1 // pred_check
      %p31 = pneg %p27
    $region7: #{cache_set_and_gather.1} parent=1 // pred_check_branch
      %33 = sbr.rel (%p31) target = $region9
    $region8: #{cache_set_and_gather.1} parent=1 // pred_region
      %s34 = sshllo.u32 0, 16
      loop: start=0, step=1, limit=1
      $region10: #{cache_set_and_gather.1} parent=8 // loop_pre_header
        _
      $region11: #{cache_set_and_gather.1} parent=8 // loop_header
        %s36 = sphi 0, %s40
        %p37 = scmp.ge.s32.totalorder %s36, 1
        %s41 = sphi %s25, %s25
        %s42 = sphi [#allocation7], [#allocation7]
      $region12: #{cache_set_and_gather.1} parent=8 // loop_header_branch
        %39 = sbr.rel (%p37) target = $region16
      $region13: #{cache_set_and_gather.1} parent=8 // loop_body
        %v43 = vld [vmem:[%s41] sm:%s34]
        %44 = vst [vmem:[%s42] sm:%s34] %v43
      $region14: #{cache_set_and_gather.1} parent=8 // loop_footer
        %s40 = sadd.s32 1, %s36
      $region15: #{cache_set_and_gather.1} parent=8 // loop_footer_branch
        %35 = sbr.rel target = $region11
      $region16: #{cache_set_and_gather.1} parent=8 // loop_exit
        _
    $region9: #{cache_set_and_gather.1} parent=1 // pred_fallthru
      _
    // Predicated region
    $region32: #{cache_set_and_gather.1} parent=1 // pred_check
      _
    $region33: #{cache_set_and_gather.1} parent=1 // pred_check_branch
      %68 = sbr.rel (0) target = $region35
    $region34: #{cache_set_and_gather.1} parent=1 // pred_region
      %69 = vsyncadd [#allocation2], 256
    $region35: #{cache_set_and_gather.1} parent=1 // pred_fallthru
      _
    %s70 = sadd.s32 %s22, 1
    %s71 = sld [smem:[#allocation6 + %s70]]
    %s72 = smul.u32 %s71, 16
    %s73 = scalar_lea.vmem %s2, %s72
    %s74 = scalar_lea.vmem [#allocation7], 16
    %s75 = scalar_lea.sflag [#allocation2], 1
    %p77 = scmp.lt.u32.totalorder 16, 8
    %p78 = pneg %p77
    // Predicated region
    $region36: #{cache_set_and_gather.1} parent=1 // pred_check
      _
    $region37: #{cache_set_and_gather.1} parent=1 // pred_check_branch
      %80 = sbr.rel (%p77) target = $region39
    $region38: #{cache_set_and_gather.1} parent=1 // pred_region
      %s95 = sand.u32 16, 7
      %p96 = scmp.eq.s32.totalorder %s95, 0
      // Predicated region
      $region51: #{cache_set_and_gather.1} parent=38 // pred_check
        %p97 = pneg %p96
      $region52: #{cache_set_and_gather.1} parent=38 // pred_check_branch
        %99 = sbr.rel (%p97) target = $region54
      $region53: #{cache_set_and_gather.1} parent=38 // pred_region
        loop: start=0, step=1, limit=1
        $region55: #{cache_set_and_gather.1} parent=53 // loop_pre_header
          _
        $region56: #{cache_set_and_gather.1} parent=53 // loop_header
          %s101 = sphi 0, %s105
          %p102 = scmp.ge.s32.totalorder %s101, 1
          %s106 = sphi %s73, %s73
          %s107 = sphi %s74, %s74
        $region57: #{cache_set_and_gather.1} parent=53 // loop_header_branch
          %104 = sbr.rel (%p102) target = $region61
        $region58: #{cache_set_and_gather.1} parent=53 // loop_body
          %v108 = vld [vmem:[%s106] sm:$0xff]
          %109 = vst [vmem:[%s107] sm:$0xff] %v108
          %v110 = vld [vmem:[%s106 + $0x8] sm:$0xff]
          %111 = vst [vmem:[%s107 + $0x8] sm:$0xff] %v110
        $region59: #{cache_set_and_gather.1} parent=53 // loop_footer
          %s105 = sadd.s32 1, %s101
        $region60: #{cache_set_and_gather.1} parent=53 // loop_footer_branch
          %100 = sbr.rel target = $region56
        $region61: #{cache_set_and_gather.1} parent=53 // loop_exit
          _
      $region54: #{cache_set_and_gather.1} parent=38 // pred_fallthru
        _
      %p112 = pneg %p96
      // Predicated region
      $region62: #{cache_set_and_gather.1} parent=38 // pred_check
        _
      $region63: #{cache_set_and_gather.1} parent=38 // pred_check_branch
        %114 = sbr.rel (%p96) target = $region65
      $region64: #{cache_set_and_gather.1} parent=38 // pred_region
        %s115 = sand.u32 16, 7
      $region65: #{cache_set_and_gather.1} parent=38 // pred_fallthru
        _
    $region39: #{cache_set_and_gather.1} parent=1 // pred_fallthru
      _
    // Predicated region
    $region40: #{cache_set_and_gather.1} parent=1 // pred_check
      %p81 = pneg %p77
    $region41: #{cache_set_and_gather.1} parent=1 // pred_check_branch
      %83 = sbr.rel (%p81) target = $region43
    $region42: #{cache_set_and_gather.1} parent=1 // pred_region
      %s84 = sshllo.u32 0, 16
      loop: start=0, step=1, limit=1
      $region44: #{cache_set_and_gather.1} parent=42 // loop_pre_header
        _
      $region45: #{cache_set_and_gather.1} parent=42 // loop_header
        %s86 = sphi 0, %s90
        %p87 = scmp.ge.s32.totalorder %s86, 1
        %s91 = sphi %s73, %s73
        %s92 = sphi %s74, %s74
      $region46: #{cache_set_and_gather.1} parent=42 // loop_header_branch
        %89 = sbr.rel (%p87) target = $region50
      $region47: #{cache_set_and_gather.1} parent=42 // loop_body
        %v93 = vld [vmem:[%s91] sm:%s84]
        %94 = vst [vmem:[%s92] sm:%s84] %v93
      $region48: #{cache_set_and_gather.1} parent=42 // loop_footer
        %s90 = sadd.s32 1, %s86
      $region49: #{cache_set_and_gather.1} parent=42 // loop_footer_branch
        %85 = sbr.rel target = $region45
      $region50: #{cache_set_and_gather.1} parent=42 // loop_exit
        _
    $region43: #{cache_set_and_gather.1} parent=1 // pred_fallthru
      _
    // Predicated region
    $region66: #{cache_set_and_gather.1} parent=1 // pred_check
      _
    $region67: #{cache_set_and_gather.1} parent=1 // pred_check_branch
      %118 = sbr.rel (0) target = $region69
    $region68: #{cache_set_and_gather.1} parent=1 // pred_region
      %119 = vsyncadd %s75, 256
    $region69: #{cache_set_and_gather.1} parent=1 // pred_fallthru
      _
    %s120 = sadd.s32 %s22, 2
    %s121 = sld [smem:[#allocation6 + %s120]]
    %s122 = smul.u32 %s121, 16
    %s123 = scalar_lea.vmem %s2, %s122
    %s124 = scalar_lea.vmem [#allocation7], 32
    %s125 = scalar_lea.sflag [#allocation2], 2
    %p127 = scmp.lt.u32.totalorder 16, 8
    %p128 = pneg %p127
    // Predicated region
    $region70: #{cache_set_and_gather.1} parent=1 // pred_check
      _
    $region71: #{cache_set_and_gather.1} parent=1 // pred_check_branch
      %130 = sbr.rel (%p127) target = $region73
    $region72: #{cache_set_and_gather.1} parent=1 // pred_region
      %s145 = sand.u32 16, 7
      %p146 = scmp.eq.s32.totalorder %s145, 0
      // Predicated region
      $region85: #{cache_set_and_gather.1} parent=72 // pred_check
        %p147 = pneg %p146
      $region86: #{cache_set_and_gather.1} parent=72 // pred_check_branch
        %149 = sbr.rel (%p147) target = $region88
      $region87: #{cache_set_and_gather.1} parent=72 // pred_region
        loop: start=0, step=1, limit=1
        $region89: #{cache_set_and_gather.1} parent=87 // loop_pre_header
          _
        $region90: #{cache_set_and_gather.1} parent=87 // loop_header
          %s151 = sphi 0, %s155
          %p152 = scmp.ge.s32.totalorder %s151, 1
          %s156 = sphi %s123, %s123
          %s157 = sphi %s124, %s124
        $region91: #{cache_set_and_gather.1} parent=87 // loop_header_branch
          %154 = sbr.rel (%p152) target = $region95
        $region92: #{cache_set_and_gather.1} parent=87 // loop_body
          %v158 = vld [vmem:[%s156] sm:$0xff]
          %159 = vst [vmem:[%s157] sm:$0xff] %v158
          %v160 = vld [vmem:[%s156 + $0x8] sm:$0xff]
          %161 = vst [vmem:[%s157 + $0x8] sm:$0xff] %v160
        $region93: #{cache_set_and_gather.1} parent=87 // loop_footer
          %s155 = sadd.s32 1, %s151
        $region94: #{cache_set_and_gather.1} parent=87 // loop_footer_branch
          %150 = sbr.rel target = $region90
        $region95: #{cache_set_and_gather.1} parent=87 // loop_exit
          _
      $region88: #{cache_set_and_gather.1} parent=72 // pred_fallthru
        _
      %p162 = pneg %p146
      // Predicated region
      $region96: #{cache_set_and_gather.1} parent=72 // pred_check
        _
      $region97: #{cache_set_and_gather.1} parent=72 // pred_check_branch
        %164 = sbr.rel (%p146) target = $region99
      $region98: #{cache_set_and_gather.1} parent=72 // pred_region
        %s165 = sand.u32 16, 7
      $region99: #{cache_set_and_gather.1} parent=72 // pred_fallthru
        _
    $region73: #{cache_set_and_gather.1} parent=1 // pred_fallthru
      _
    // Predicated region
    $region74: #{cache_set_and_gather.1} parent=1 // pred_check
      %p131 = pneg %p127
    $region75: #{cache_set_and_gather.1} parent=1 // pred_check_branch
      %133 = sbr.rel (%p131) target = $region77
    $region76: #{cache_set_and_gather.1} parent=1 // pred_region
      %s134 = sshllo.u32 0, 16
      loop: start=0, step=1, limit=1
      $region78: #{cache_set_and_gather.1} parent=76 // loop_pre_header
        _
      $region79: #{cache_set_and_gather.1} parent=76 // loop_header
        %s136 = sphi 0, %s140
        %p137 = scmp.ge.s32.totalorder %s136, 1
        %s141 = sphi %s123, %s123
        %s142 = sphi %s124, %s124
      $region80: #{cache_set_and_gather.1} parent=76 // loop_header_branch
        %139 = sbr.rel (%p137) target = $region84
      $region81: #{cache_set_and_gather.1} parent=76 // loop_body
        %v143 = vld [vmem:[%s141] sm:%s134]
        %144 = vst [vmem:[%s142] sm:%s134] %v143
      $region82: #{cache_set_and_gather.1} parent=76 // loop_footer
        %s140 = sadd.s32 1, %s136
      $region83: #{cache_set_and_gather.1} parent=76 // loop_footer_branch
        %135 = sbr.rel target = $region79
      $region84: #{cache_set_and_gather.1} parent=76 // loop_exit
        _
    $region77: #{cache_set_and_gather.1} parent=1 // pred_fallthru
      _
    // Predicated region
    $region100: #{cache_set_and_gather.1} parent=1 // pred_check
      _
    $region101: #{cache_set_and_gather.1} parent=1 // pred_check_branch
      %168 = sbr.rel (0) target = $region103
    $region102: #{cache_set_and_gather.1} parent=1 // pred_region
      %169 = vsyncadd %s125, 256
    $region103: #{cache_set_and_gather.1} parent=1 // pred_fallthru
      _
    %s170 = sadd.s32 %s22, 3
    %s171 = sld [smem:[#allocation6 + %s170]]
    %s172 = smul.u32 %s171, 16
    %s173 = scalar_lea.vmem %s2, %s172
    %s174 = scalar_lea.vmem [#allocation7], 48
    %s175 = scalar_lea.sflag [#allocation2], 3
    %p177 = scmp.lt.u32.totalorder 16, 8
    %p178 = pneg %p177
    // Predicated region
    $region104: #{cache_set_and_gather.1} parent=1 // pred_check
      _
    $region105: #{cache_set_and_gather.1} parent=1 // pred_check_branch
      %180 = sbr.rel (%p177) target = $region107
    $region106: #{cache_set_and_gather.1} parent=1 // pred_region
      %s195 = sand.u32 16, 7
      %p196 = scmp.eq.s32.totalorder %s195, 0
      // Predicated region
      $region119: #{cache_set_and_gather.1} parent=106 // pred_check
        %p197 = pneg %p196
      $region120: #{cache_set_and_gather.1} parent=106 // pred_check_branch
        %199 = sbr.rel (%p197) target = $region122
      $region121: #{cache_set_and_gather.1} parent=106 // pred_region
        loop: start=0, step=1, limit=1
        $region123: #{cache_set_and_gather.1} parent=121 // loop_pre_header
          _
        $region124: #{cache_set_and_gather.1} parent=121 // loop_header
          %s201 = sphi 0, %s205
          %p202 = scmp.ge.s32.totalorder %s201, 1
          %s206 = sphi %s173, %s173
          %s207 = sphi %s174, %s174
        $region125: #{cache_set_and_gather.1} parent=121 // loop_header_branch
          %204 = sbr.rel (%p202) target = $region129
        $region126: #{cache_set_and_gather.1} parent=121 // loop_body
          %v208 = vld [vmem:[%s206] sm:$0xff]
          %209 = vst [vmem:[%s207] sm:$0xff] %v208
          %v210 = vld [vmem:[%s206 + $0x8] sm:$0xff]
          %211 = vst [vmem:[%s207 + $0x8] sm:$0xff] %v210
        $region127: #{cache_set_and_gather.1} parent=121 // loop_footer
          %s205 = sadd.s32 1, %s201
        $region128: #{cache_set_and_gather.1} parent=121 // loop_footer_branch
          %200 = sbr.rel target = $region124
        $region129: #{cache_set_and_gather.1} parent=121 // loop_exit
          _
      $region122: #{cache_set_and_gather.1} parent=106 // pred_fallthru
        _
      %p212 = pneg %p196
      // Predicated region
      $region130: #{cache_set_and_gather.1} parent=106 // pred_check
        _
      $region131: #{cache_set_and_gather.1} parent=106 // pred_check_branch
        %214 = sbr.rel (%p196) target = $region133
      $region132: #{cache_set_and_gather.1} parent=106 // pred_region
        %s215 = sand.u32 16, 7
      $region133: #{cache_set_and_gather.1} parent=106 // pred_fallthru
        _
    $region107: #{cache_set_and_gather.1} parent=1 // pred_fallthru
      _
    // Predicated region
    $region108: #{cache_set_and_gather.1} parent=1 // pred_check
      %p181 = pneg %p177
    $region109: #{cache_set_and_gather.1} parent=1 // pred_check_branch
      %183 = sbr.rel (%p181) target = $region111
    $region110: #{cache_set_and_gather.1} parent=1 // pred_region
      %s184 = sshllo.u32 0, 16
      loop: start=0, step=1, limit=1
      $region112: #{cache_set_and_gather.1} parent=110 // loop_pre_header
        _
      $region113: #{cache_set_and_gather.1} parent=110 // loop_header
        %s186 = sphi 0, %s190
        %p187 = scmp.ge.s32.totalorder %s186, 1
        %s191 = sphi %s173, %s173
        %s192 = sphi %s174, %s174
      $region114: #{cache_set_and_gather.1} parent=110 // loop_header_branch
        %189 = sbr.rel (%p187) target = $region118
      $region115: #{cache_set_and_gather.1} parent=110 // loop_body
        %v193 = vld [vmem:[%s191] sm:%s184]
        %194 = vst [vmem:[%s192] sm:%s184] %v193
      $region116: #{cache_set_and_gather.1} parent=110 // loop_footer
        %s190 = sadd.s32 1, %s186
      $region117: #{cache_set_and_gather.1} parent=110 // loop_footer_branch
        %185 = sbr.rel target = $region113
      $region118: #{cache_set_and_gather.1} parent=110 // loop_exit
        _
    $region111: #{cache_set_and_gather.1} parent=1 // pred_fallthru
      _
    // Predicated region
    $region134: #{cache_set_and_gather.1} parent=1 // pred_check
      _
    $region135: #{cache_set_and_gather.1} parent=1 // pred_check_branch
      %218 = sbr.rel (0) target = $region137
    $region136: #{cache_set_and_gather.1} parent=1 // pred_region
      %219 = vsyncadd %s175, 256
    $region137: #{cache_set_and_gather.1} parent=1 // pred_fallthru
      _
    %s220 = sadd.s32 %s22, 4
    %s221 = sld [smem:[#allocation6 + %s220]]
    %s222 = smul.u32 %s221, 16
    %s223 = scalar_lea.vmem %s2, %s222
    %s224 = scalar_lea.vmem [#allocation7], 64
    %s225 = scalar_lea.sflag [#allocation2], 4
    %p227 = scmp.lt.u32.totalorder 16, 8
    %p228 = pneg %p227
    // Predicated region
    $region138: #{cache_set_and_gather.1} parent=1 // pred_check
      _
    $region139: #{cache_set_and_gather.1} parent=1 // pred_check_branch
      %230 = sbr.rel (%p227) target = $region141
    $region140: #{cache_set_and_gather.1} parent=1 // pred_region
      %s245 = sand.u32 16, 7
      %p246 = scmp.eq.s32.totalorder %s245, 0
      // Predicated region
      $region153: #{cache_set_and_gather.1} parent=140 // pred_check
        %p247 = pneg %p246
      $region154: #{cache_set_and_gather.1} parent=140 // pred_check_branch
        %249 = sbr.rel (%p247) target = $region156
      $region155: #{cache_set_and_gather.1} parent=140 // pred_region
        loop: start=0, step=1, limit=1
        $region157: #{cache_set_and_gather.1} parent=155 // loop_pre_header
          _
        $region158: #{cache_set_and_gather.1} parent=155 // loop_header
          %s251 = sphi 0, %s255
          %p252 = scmp.ge.s32.totalorder %s251, 1
          %s256 = sphi %s223, %s223
          %s257 = sphi %s224, %s224
        $region159: #{cache_set_and_gather.1} parent=155 // loop_header_branch
          %254 = sbr.rel (%p252) target = $region163
        $region160: #{cache_set_and_gather.1} parent=155 // loop_body
          %v258 = vld [vmem:[%s256] sm:$0xff]
          %259 = vst [vmem:[%s257] sm:$0xff] %v258
          %v260 = vld [vmem:[%s256 + $0x8] sm:$0xff]
          %261 = vst [vmem:[%s257 + $0x8] sm:$0xff] %v260
        $region161: #{cache_set_and_gather.1} parent=155 // loop_footer
          %s255 = sadd.s32 1, %s251
        $region162: #{cache_set_and_gather.1} parent=155 // loop_footer_branch
          %250 = sbr.rel target = $region158
        $region163: #{cache_set_and_gather.1} parent=155 // loop_exit
          _
      $region156: #{cache_set_and_gather.1} parent=140 // pred_fallthru
        _
      %p262 = pneg %p246
      // Predicated region
      $region164: #{cache_set_and_gather.1} parent=140 // pred_check
        _
      $region165: #{cache_set_and_gather.1} parent=140 // pred_check_branch
        %264 = sbr.rel (%p246) target = $region167
      $region166: #{cache_set_and_gather.1} parent=140 // pred_region
        %s265 = sand.u32 16, 7
      $region167: #{cache_set_and_gather.1} parent=140 // pred_fallthru
        _
    $region141: #{cache_set_and_gather.1} parent=1 // pred_fallthru
      _
    // Predicated region
    $region142: #{cache_set_and_gather.1} parent=1 // pred_check
      %p231 = pneg %p227
    $region143: #{cache_set_and_gather.1} parent=1 // pred_check_branch
      %233 = sbr.rel (%p231) target = $region145
    $region144: #{cache_set_and_gather.1} parent=1 // pred_region
      %s234 = sshllo.u32 0, 16
      loop: start=0, step=1, limit=1
      $region146: #{cache_set_and_gather.1} parent=144 // loop_pre_header
        _
      $region147: #{cache_set_and_gather.1} parent=144 // loop_header
        %s236 = sphi 0, %s240
        %p237 = scmp.ge.s32.totalorder %s236, 1
        %s241 = sphi %s223, %s223
        %s242 = sphi %s224, %s224
      $region148: #{cache_set_and_gather.1} parent=144 // loop_header_branch
        %239 = sbr.rel (%p237) target = $region152
      $region149: #{cache_set_and_gather.1} parent=144 // loop_body
        %v243 = vld [vmem:[%s241] sm:%s234]
        %244 = vst [vmem:[%s242] sm:%s234] %v243
      $region150: #{cache_set_and_gather.1} parent=144 // loop_footer
        %s240 = sadd.s32 1, %s236
      $region151: #{cache_set_and_gather.1} parent=144 // loop_footer_branch
        %235 = sbr.rel target = $region147
      $region152: #{cache_set_and_gather.1} parent=144 // loop_exit
        _
    $region145: #{cache_set_and_gather.1} parent=1 // pred_fallthru
      _
    // Predicated region
    $region168: #{cache_set_and_gather.1} parent=1 // pred_check
      _
    $region169: #{cache_set_and_gather.1} parent=1 // pred_check_branch
      %268 = sbr.rel (0) target = $region171
    $region170: #{cache_set_and_gather.1} parent=1 // pred_region
      %269 = vsyncadd %s225, 256
    $region171: #{cache_set_and_gather.1} parent=1 // pred_fallthru
      _
    %s270 = sadd.s32 %s22, 5
    %s271 = sld [smem:[#allocation6 + %s270]]
    %s272 = smul.u32 %s271, 16
    %s273 = scalar_lea.vmem %s2, %s272
    %s274 = scalar_lea.vmem [#allocation7], 80
    %s275 = scalar_lea.sflag [#allocation2], 5
    %p277 = scmp.lt.u32.totalorder 16, 8
    %p278 = pneg %p277
    // Predicated region
    $region172: #{cache_set_and_gather.1} parent=1 // pred_check
      _
    $region173: #{cache_set_and_gather.1} parent=1 // pred_check_branch
      %280 = sbr.rel (%p277) target = $region175
    $region174: #{cache_set_and_gather.1} parent=1 // pred_region
      %s295 = sand.u32 16, 7
      %p296 = scmp.eq.s32.totalorder %s295, 0
      // Predicated region
      $region187: #{cache_set_and_gather.1} parent=174 // pred_check
        %p297 = pneg %p296
      $region188: #{cache_set_and_gather.1} parent=174 // pred_check_branch
        %299 = sbr.rel (%p297) target = $region190
      $region189: #{cache_set_and_gather.1} parent=174 // pred_region
        loop: start=0, step=1, limit=1
        $region191: #{cache_set_and_gather.1} parent=189 // loop_pre_header
          _
        $region192: #{cache_set_and_gather.1} parent=189 // loop_header
          %s301 = sphi 0, %s305
          %p302 = scmp.ge.s32.totalorder %s301, 1
          %s306 = sphi %s273, %s273
          %s307 = sphi %s274, %s274
        $region193: #{cache_set_and_gather.1} parent=189 // loop_header_branch
          %304 = sbr.rel (%p302) target = $region197
        $region194: #{cache_set_and_gather.1} parent=189 // loop_body
          %v308 = vld [vmem:[%s306] sm:$0xff]
          %309 = vst [vmem:[%s307] sm:$0xff] %v308
          %v310 = vld [vmem:[%s306 + $0x8] sm:$0xff]
          %311 = vst [vmem:[%s307 + $0x8] sm:$0xff] %v310
        $region195: #{cache_set_and_gather.1} parent=189 // loop_footer
          %s305 = sadd.s32 1, %s301
        $region196: #{cache_set_and_gather.1} parent=189 // loop_footer_branch
          %300 = sbr.rel target = $region192
        $region197: #{cache_set_and_gather.1} parent=189 // loop_exit
          _
      $region190: #{cache_set_and_gather.1} parent=174 // pred_fallthru
        _
      %p312 = pneg %p296
      // Predicated region
      $region198: #{cache_set_and_gather.1} parent=174 // pred_check
        _
      $region199: #{cache_set_and_gather.1} parent=174 // pred_check_branch
        %314 = sbr.rel (%p296) target = $region201
      $region200: #{cache_set_and_gather.1} parent=174 // pred_region
        %s315 = sand.u32 16, 7
      $region201: #{cache_set_and_gather.1} parent=174 // pred_fallthru
        _
    $region175: #{cache_set_and_gather.1} parent=1 // pred_fallthru
      _
    // Predicated region
    $region176: #{cache_set_and_gather.1} parent=1 // pred_check
      %p281 = pneg %p277
    $region177: #{cache_set_and_gather.1} parent=1 // pred_check_branch
      %283 = sbr.rel (%p281) target = $region179
    $region178: #{cache_set_and_gather.1} parent=1 // pred_region
      %s284 = sshllo.u32 0, 16
      loop: start=0, step=1, limit=1
      $region180: #{cache_set_and_gather.1} parent=178 // loop_pre_header
        _
      $region181: #{cache_set_and_gather.1} parent=178 // loop_header
        %s286 = sphi 0, %s290
        %p287 = scmp.ge.s32.totalorder %s286, 1
        %s291 = sphi %s273, %s273
        %s292 = sphi %s274, %s274
      $region182: #{cache_set_and_gather.1} parent=178 // loop_header_branch
        %289 = sbr.rel (%p287) target = $region186
      $region183: #{cache_set_and_gather.1} parent=178 // loop_body
        %v293 = vld [vmem:[%s291] sm:%s284]
        %294 = vst [vmem:[%s292] sm:%s284] %v293
      $region184: #{cache_set_and_gather.1} parent=178 // loop_footer
        %s290 = sadd.s32 1, %s286
      $region185: #{cache_set_and_gather.1} parent=178 // loop_footer_branch
        %285 = sbr.rel target = $region181
      $region186: #{cache_set_and_gather.1} parent=178 // loop_exit
        _
    $region179: #{cache_set_and_gather.1} parent=1 // pred_fallthru
      _
    // Predicated region
    $region202: #{cache_set_and_gather.1} parent=1 // pred_check
      _
    $region203: #{cache_set_and_gather.1} parent=1 // pred_check_branch
      %318 = sbr.rel (0) target = $region205
    $region204: #{cache_set_and_gather.1} parent=1 // pred_region
      %319 = vsyncadd %s275, 256
    $region205: #{cache_set_and_gather.1} parent=1 // pred_fallthru
      _
    %s320 = sadd.s32 %s22, 6
    %s321 = sld [smem:[#allocation6 + %s320]]
    %s322 = smul.u32 %s321, 16
    %s323 = scalar_lea.vmem %s2, %s322
    %s324 = scalar_lea.vmem [#allocation7], 96
    %s325 = scalar_lea.sflag [#allocation2], 6
    %p327 = scmp.lt.u32.totalorder 16, 8
    %p328 = pneg %p327
    // Predicated region
    $region206: #{cache_set_and_gather.1} parent=1 // pred_check
      _
    $region207: #{cache_set_and_gather.1} parent=1 // pred_check_branch
      %330 = sbr.rel (%p327) target = $region209
    $region208: #{cache_set_and_gather.1} parent=1 // pred_region
      %s345 = sand.u32 16, 7
      %p346 = scmp.eq.s32.totalorder %s345, 0
      // Predicated region
      $region221: #{cache_set_and_gather.1} parent=208 // pred_check
        %p347 = pneg %p346
      $region222: #{cache_set_and_gather.1} parent=208 // pred_check_branch
        %349 = sbr.rel (%p347) target = $region224
      $region223: #{cache_set_and_gather.1} parent=208 // pred_region
        loop: start=0, step=1, limit=1
        $region225: #{cache_set_and_gather.1} parent=223 // loop_pre_header
          _
        $region226: #{cache_set_and_gather.1} parent=223 // loop_header
          %s351 = sphi 0, %s355
          %p352 = scmp.ge.s32.totalorder %s351, 1
          %s356 = sphi %s323, %s323
          %s357 = sphi %s324, %s324
        $region227: #{cache_set_and_gather.1} parent=223 // loop_header_branch
          %354 = sbr.rel (%p352) target = $region231
        $region228: #{cache_set_and_gather.1} parent=223 // loop_body
          %v358 = vld [vmem:[%s356] sm:$0xff]
          %359 = vst [vmem:[%s357] sm:$0xff] %v358
          %v360 = vld [vmem:[%s356 + $0x8] sm:$0xff]
          %361 = vst [vmem:[%s357 + $0x8] sm:$0xff] %v360
        $region229: #{cache_set_and_gather.1} parent=223 // loop_footer
          %s355 = sadd.s32 1, %s351
        $region230: #{cache_set_and_gather.1} parent=223 // loop_footer_branch
          %350 = sbr.rel target = $region226
        $region231: #{cache_set_and_gather.1} parent=223 // loop_exit
          _
      $region224: #{cache_set_and_gather.1} parent=208 // pred_fallthru
        _
      %p362 = pneg %p346
      // Predicated region
      $region232: #{cache_set_and_gather.1} parent=208 // pred_check
        _
      $region233: #{cache_set_and_gather.1} parent=208 // pred_check_branch
        %364 = sbr.rel (%p346) target = $region235
      $region234: #{cache_set_and_gather.1} parent=208 // pred_region
        %s365 = sand.u32 16, 7
      $region235: #{cache_set_and_gather.1} parent=208 // pred_fallthru
        _
    $region209: #{cache_set_and_gather.1} parent=1 // pred_fallthru
      _
    // Predicated region
    $region210: #{cache_set_and_gather.1} parent=1 // pred_check
      %p331 = pneg %p327
    $region211: #{cache_set_and_gather.1} parent=1 // pred_check_branch
      %333 = sbr.rel (%p331) target = $region213
    $region212: #{cache_set_and_gather.1} parent=1 // pred_region
      %s334 = sshllo.u32 0, 16
      loop: start=0, step=1, limit=1
      $region214: #{cache_set_and_gather.1} parent=212 // loop_pre_header
        _
      $region215: #{cache_set_and_gather.1} parent=212 // loop_header
        %s336 = sphi 0, %s340
        %p337 = scmp.ge.s32.totalorder %s336, 1
        %s341 = sphi %s323, %s323
        %s342 = sphi %s324, %s324
      $region216: #{cache_set_and_gather.1} parent=212 // loop_header_branch
        %339 = sbr.rel (%p337) target = $region220
      $region217: #{cache_set_and_gather.1} parent=212 // loop_body
        %v343 = vld [vmem:[%s341] sm:%s334]
        %344 = vst [vmem:[%s342] sm:%s334] %v343
      $region218: #{cache_set_and_gather.1} parent=212 // loop_footer
        %s340 = sadd.s32 1, %s336
      $region219: #{cache_set_and_gather.1} parent=212 // loop_footer_branch
        %335 = sbr.rel target = $region215
      $region220: #{cache_set_and_gather.1} parent=212 // loop_exit
        _
    $region213: #{cache_set_and_gather.1} parent=1 // pred_fallthru
      _
    // Predicated region
    $region236: #{cache_set_and_gather.1} parent=1 // pred_check
      _
    $region237: #{cache_set_and_gather.1} parent=1 // pred_check_branch
      %368 = sbr.rel (0) target = $region239
    $region238: #{cache_set_and_gather.1} parent=1 // pred_region
      %369 = vsyncadd %s325, 256
    $region239: #{cache_set_and_gather.1} parent=1 // pred_fallthru
      _
    %s370 = sadd.s32 %s22, 7
    %s371 = sld [smem:[#allocation6 + %s370]]
    %s372 = smul.u32 %s371, 16
    %s373 = scalar_lea.vmem %s2, %s372
    %s374 = scalar_lea.vmem [#allocation7], 112
    %s375 = scalar_lea.sflag [#allocation2], 7
    %p377 = scmp.lt.u32.totalorder 16, 8
    %p378 = pneg %p377
    // Predicated region
    $region240: #{cache_set_and_gather.1} parent=1 // pred_check
      _
    $region241: #{cache_set_and_gather.1} parent=1 // pred_check_branch
      %380 = sbr.rel (%p377) target = $region243
    $region242: #{cache_set_and_gather.1} parent=1 // pred_region
      %s395 = sand.u32 16, 7
      %p396 = scmp.eq.s32.totalorder %s395, 0
      // Predicated region
      $region255: #{cache_set_and_gather.1} parent=242 // pred_check
        %p397 = pneg %p396
      $region256: #{cache_set_and_gather.1} parent=242 // pred_check_branch
        %399 = sbr.rel (%p397) target = $region258
      $region257: #{cache_set_and_gather.1} parent=242 // pred_region
        loop: start=0, step=1, limit=1
        $region259: #{cache_set_and_gather.1} parent=257 // loop_pre_header
          _
        $region260: #{cache_set_and_gather.1} parent=257 // loop_header
          %s401 = sphi 0, %s405
          %p402 = scmp.ge.s32.totalorder %s401, 1
          %s406 = sphi %s373, %s373
          %s407 = sphi %s374, %s374
        $region261: #{cache_set_and_gather.1} parent=257 // loop_header_branch
          %404 = sbr.rel (%p402) target = $region265
        $region262: #{cache_set_and_gather.1} parent=257 // loop_body
          %v408 = vld [vmem:[%s406] sm:$0xff]
          %409 = vst [vmem:[%s407] sm:$0xff] %v408
          %v410 = vld [vmem:[%s406 + $0x8] sm:$0xff]
          %411 = vst [vmem:[%s407 + $0x8] sm:$0xff] %v410
        $region263: #{cache_set_and_gather.1} parent=257 // loop_footer
          %s405 = sadd.s32 1, %s401
        $region264: #{cache_set_and_gather.1} parent=257 // loop_footer_branch
          %400 = sbr.rel target = $region260
        $region265: #{cache_set_and_gather.1} parent=257 // loop_exit
          _
      $region258: #{cache_set_and_gather.1} parent=242 // pred_fallthru
        _
      %p412 = pneg %p396
      // Predicated region
      $region266: #{cache_set_and_gather.1} parent=242 // pred_check
        _
      $region267: #{cache_set_and_gather.1} parent=242 // pred_check_branch
        %414 = sbr.rel (%p396) target = $region269
      $region268: #{cache_set_and_gather.1} parent=242 // pred_region
        %s415 = sand.u32 16, 7
      $region269: #{cache_set_and_gather.1} parent=242 // pred_fallthru
        _
    $region243: #{cache_set_and_gather.1} parent=1 // pred_fallthru
      _
    // Predicated region
    $region244: #{cache_set_and_gather.1} parent=1 // pred_check
      %p381 = pneg %p377
    $region245: #{cache_set_and_gather.1} parent=1 // pred_check_branch
      %383 = sbr.rel (%p381) target = $region247
    $region246: #{cache_set_and_gather.1} parent=1 // pred_region
      %s384 = sshllo.u32 0, 16
      loop: start=0, step=1, limit=1
      $region248: #{cache_set_and_gather.1} parent=246 // loop_pre_header
        _
      $region249: #{cache_set_and_gather.1} parent=246 // loop_header
        %s386 = sphi 0, %s390
        %p387 = scmp.ge.s32.totalorder %s386, 1
        %s391 = sphi %s373, %s373
        %s392 = sphi %s374, %s374
      $region250: #{cache_set_and_gather.1} parent=246 // loop_header_branch
        %389 = sbr.rel (%p387) target = $region254
      $region251: #{cache_set_and_gather.1} parent=246 // loop_body
        %v393 = vld [vmem:[%s391] sm:%s384]
        %394 = vst [vmem:[%s392] sm:%s384] %v393
      $region252: #{cache_set_and_gather.1} parent=246 // loop_footer
        %s390 = sadd.s32 1, %s386
      $region253: #{cache_set_and_gather.1} parent=246 // loop_footer_branch
        %385 = sbr.rel target = $region249
      $region254: #{cache_set_and_gather.1} parent=246 // loop_exit
        _
    $region247: #{cache_set_and_gather.1} parent=1 // pred_fallthru
      _
    // Predicated region
    $region270: #{cache_set_and_gather.1} parent=1 // pred_check
      _
    $region271: #{cache_set_and_gather.1} parent=1 // pred_check_branch
      %418 = sbr.rel (0) target = $region273
    $region272: #{cache_set_and_gather.1} parent=1 // pred_region
      %419 = vsyncadd %s375, 256
    $region273: #{cache_set_and_gather.1} parent=1 // pred_fallthru
      _
    %s420 = sld [smem:[#allocation6 + %s22]]
    %s421 = smul.u32 16, 1
    %s422 = sshll.u32 %s421, 4
    %423 = dma.done [#allocation2], %s422
    %s424 = sld [smem:[#allocation5 + %s22]]
    %s425 = smul.u32 %s424, 16
    %s426 = smul.addr %s425, 16
    %s427 = scalar_lea.hbm %s4, %s426
    // Predicated region
    $region274: #{cache_set_and_gather.1} parent=1 // pred_check
      _
    $region275: #{cache_set_and_gather.1} parent=1 // pred_check_branch
      %429 = sbr.rel target = $region277
    $region276: #{cache_set_and_gather.1} parent=1 // pred_region
      %430 = sst [smem:[#allocation19]] [#allocation18]
      %431 = sst [smem:[#allocation20]] [#allocation17]
    $region277: #{cache_set_and_gather.1} parent=1 // pred_fallthru
      _
    %433 = shalt.err (0)
    %s435 = sshll.u32 [#allocation7], 4
    %s436 = int_to_ptr.vmem [resolvable:$true] %s435
    %438 = dma.vmem_to_hbm [thread:$0]  %s436, 256, %s427, [#allocation3]
    %s439 = sld [smem:[#allocation6 + %s70]]
    %s440 = sshll.u32 %s421, 4
    %441 = dma.done %s75, %s440
    %s442 = sld [smem:[#allocation5 + %s70]]
    %s443 = smul.u32 %s442, 16
    %s444 = smul.addr %s443, 16
    %s445 = scalar_lea.hbm %s4, %s444
    %s446 = scalar_lea.sflag [#allocation3], 1
    // Predicated region
    $region278: #{cache_set_and_gather.1} parent=1 // pred_check
      _
    $region279: #{cache_set_and_gather.1} parent=1 // pred_check_branch
      %448 = sbr.rel target = $region281
    $region280: #{cache_set_and_gather.1} parent=1 // pred_region
      %449 = sst [smem:[#allocation19]] [#allocation22]
      %450 = sst [smem:[#allocation20]] [#allocation21]
    $region281: #{cache_set_and_gather.1} parent=1 // pred_fallthru
      _
    %452 = shalt.err (0)
    %s454 = sshll.u32 %s74, 4
    %s455 = int_to_ptr.vmem [resolvable:$true] %s454
    %457 = dma.vmem_to_hbm [thread:$0]  %s455, 256, %s445, %s446
    %s458 = sld [smem:[#allocation6 + %s120]]
    %s459 = sshll.u32 %s421, 4
    %460 = dma.done %s125, %s459
    %s461 = sld [smem:[#allocation5 + %s120]]
    %s462 = smul.u32 %s461, 16
    %s463 = smul.addr %s462, 16
    %s464 = scalar_lea.hbm %s4, %s463
    %s465 = scalar_lea.sflag [#allocation3], 2
    // Predicated region
    $region282: #{cache_set_and_gather.1} parent=1 // pred_check
      _
    $region283: #{cache_set_and_gather.1} parent=1 // pred_check_branch
      %467 = sbr.rel target = $region285
    $region284: #{cache_set_and_gather.1} parent=1 // pred_region
      %468 = sst [smem:[#allocation19]] [#allocation24]
      %469 = sst [smem:[#allocation20]] [#allocation23]
    $region285: #{cache_set_and_gather.1} parent=1 // pred_fallthru
      _
    %471 = shalt.err (0)
    %s473 = sshll.u32 %s124, 4
    %s474 = int_to_ptr.vmem [resolvable:$true] %s473
    %476 = dma.vmem_to_hbm [thread:$0]  %s474, 256, %s464, %s465
    %s477 = sld [smem:[#allocation6 + %s170]]
    %s478 = sshll.u32 %s421, 4
    %479 = dma.done %s175, %s478
    %s480 = sld [smem:[#allocation5 + %s170]]
    %s481 = smul.u32 %s480, 16
    %s482 = smul.addr %s481, 16
    %s483 = scalar_lea.hbm %s4, %s482
    %s484 = scalar_lea.sflag [#allocation3], 3
    // Predicated region
    $region286: #{cache_set_and_gather.1} parent=1 // pred_check
      _
    $region287: #{cache_set_and_gather.1} parent=1 // pred_check_branch
      %486 = sbr.rel target = $region289
    $region288: #{cache_set_and_gather.1} parent=1 // pred_region
      %487 = sst [smem:[#allocation19]] [#allocation26]
      %488 = sst [smem:[#allocation20]] [#allocation25]
    $region289: #{cache_set_and_gather.1} parent=1 // pred_fallthru
      _
    %490 = shalt.err (0)
    %s492 = sshll.u32 %s174, 4
    %s493 = int_to_ptr.vmem [resolvable:$true] %s492
    %495 = dma.vmem_to_hbm [thread:$0]  %s493, 256, %s483, %s484
    %s496 = sld [smem:[#allocation6 + %s220]]
    %s497 = sshll.u32 %s421, 4
    %498 = dma.done %s225, %s497
    %s499 = sld [smem:[#allocation5 + %s220]]
    %s500 = smul.u32 %s499, 16
    %s501 = smul.addr %s500, 16
    %s502 = scalar_lea.hbm %s4, %s501
    %s503 = scalar_lea.sflag [#allocation3], 4
    // Predicated region
    $region290: #{cache_set_and_gather.1} parent=1 // pred_check
      _
    $region291: #{cache_set_and_gather.1} parent=1 // pred_check_branch
      %505 = sbr.rel target = $region293
    $region292: #{cache_set_and_gather.1} parent=1 // pred_region
      %506 = sst [smem:[#allocation19]] [#allocation28]
      %507 = sst [smem:[#allocation20]] [#allocation27]
    $region293: #{cache_set_and_gather.1} parent=1 // pred_fallthru
      _
    %509 = shalt.err (0)
    %s511 = sshll.u32 %s224, 4
    %s512 = int_to_ptr.vmem [resolvable:$true] %s511
    %514 = dma.vmem_to_hbm [thread:$0]  %s512, 256, %s502, %s503
    %s515 = sld [smem:[#allocation6 + %s270]]
    %s516 = sshll.u32 %s421, 4
    %517 = dma.done %s275, %s516
    %s518 = sld [smem:[#allocation5 + %s270]]
    %s519 = smul.u32 %s518, 16
    %s520 = smul.addr %s519, 16
    %s521 = scalar_lea.hbm %s4, %s520
    %s522 = scalar_lea.sflag [#allocation3], 5
    // Predicated region
    $region294: #{cache_set_and_gather.1} parent=1 // pred_check
      _
    $region295: #{cache_set_and_gather.1} parent=1 // pred_check_branch
      %524 = sbr.rel target = $region297
    $region296: #{cache_set_and_gather.1} parent=1 // pred_region
      %525 = sst [smem:[#allocation19]] [#allocation30]
      %526 = sst [smem:[#allocation20]] [#allocation29]
    $region297: #{cache_set_and_gather.1} parent=1 // pred_fallthru
      _
    %528 = shalt.err (0)
    %s530 = sshll.u32 %s274, 4
    %s531 = int_to_ptr.vmem [resolvable:$true] %s530
    %533 = dma.vmem_to_hbm [thread:$0]  %s531, 256, %s521, %s522
    %s534 = sld [smem:[#allocation6 + %s320]]
    %s535 = sshll.u32 %s421, 4
    %536 = dma.done %s325, %s535
    %s537 = sld [smem:[#allocation5 + %s320]]
    %s538 = smul.u32 %s537, 16
    %s539 = smul.addr %s538, 16
    %s540 = scalar_lea.hbm %s4, %s539
    %s541 = scalar_lea.sflag [#allocation3], 6
    // Predicated region
    $region298: #{cache_set_and_gather.1} parent=1 // pred_check
      _
    $region299: #{cache_set_and_gather.1} parent=1 // pred_check_branch
      %543 = sbr.rel target = $region301
    $region300: #{cache_set_and_gather.1} parent=1 // pred_region
      %544 = sst [smem:[#allocation19]] [#allocation32]
      %545 = sst [smem:[#allocation20]] [#allocation31]
    $region301: #{cache_set_and_gather.1} parent=1 // pred_fallthru
      _
    %547 = shalt.err (0)
    %s549 = sshll.u32 %s324, 4
    %s550 = int_to_ptr.vmem [resolvable:$true] %s549
    %552 = dma.vmem_to_hbm [thread:$0]  %s550, 256, %s540, %s541
    %s553 = sld [smem:[#allocation6 + %s370]]
    %s554 = sshll.u32 %s421, 4
    %555 = dma.done %s375, %s554
    %s556 = sld [smem:[#allocation5 + %s370]]
    %s557 = smul.u32 %s556, 16
    %s558 = smul.addr %s557, 16
    %s559 = scalar_lea.hbm %s4, %s558
    %s560 = scalar_lea.sflag [#allocation3], 7
    // Predicated region
    $region302: #{cache_set_and_gather.1} parent=1 // pred_check
      _
    $region303: #{cache_set_and_gather.1} parent=1 // pred_check_branch
      %562 = sbr.rel target = $region305
    $region304: #{cache_set_and_gather.1} parent=1 // pred_region
      %563 = sst [smem:[#allocation19]] [#allocation34]
      %564 = sst [smem:[#allocation20]] [#allocation33]
    $region305: #{cache_set_and_gather.1} parent=1 // pred_fallthru
      _
    %566 = shalt.err (0)
    %s568 = sshll.u32 %s374, 4
    %s569 = int_to_ptr.vmem [resolvable:$true] %s568
    %571 = dma.vmem_to_hbm [thread:$0]  %s569, 256, %s559, %s560
    %s572 = sld [smem:[#allocation5 + %s22]]
    %s573 = sshll.u32 %s421, 4
    %574 = dma.done [#allocation3], %s573
    %s575 = sld [smem:[#allocation5 + %s70]]
    %s576 = sshll.u32 %s421, 4
    %577 = dma.done %s446, %s576
    %s578 = sld [smem:[#allocation5 + %s120]]
    %s579 = sshll.u32 %s421, 4
    %580 = dma.done %s465, %s579
    %s581 = sld [smem:[#allocation5 + %s170]]
    %s582 = sshll.u32 %s421, 4
    %583 = dma.done %s484, %s582
    %s584 = sld [smem:[#allocation5 + %s220]]
    %s585 = sshll.u32 %s421, 4
    %586 = dma.done %s503, %s585
    %s587 = sld [smem:[#allocation5 + %s270]]
    %s588 = sshll.u32 %s421, 4
    %589 = dma.done %s522, %s588
    %s590 = sld [smem:[#allocation5 + %s320]]
    %s591 = sshll.u32 %s421, 4
    %592 = dma.done %s541, %s591
    %s593 = sld [smem:[#allocation5 + %s370]]
    %s594 = sshll.u32 %s421, 4
    %595 = dma.done %s560, %s594
    // Predicated region
    $region306: #{cache_set_and_gather.1} parent=1 // pred_check
      _
    $region307: #{cache_set_and_gather.1} parent=1 // pred_check_branch
      %597 = sbr.rel (0) target = $region309
    $region308: #{cache_set_and_gather.1} parent=1 // pred_region
      %s599 = ssub.s32 2048, 2048
      %600 = vsyncadd [#allocation8], %s599
      %s601 = sshll.u32 [#allocation7], 4
      %s602 = int_to_ptr.vmem [resolvable:$true] %s601
      %607 = dma.vmem_to_hbm [thread:$0]  %s602, 2048, %s5, [#allocation8], 128, 128, 8
    $region309: #{cache_set_and_gather.1} parent=1 // pred_fallthru
      _
    // Predicated region
    $region310: #{cache_set_and_gather.1} parent=1 // pred_check
      _
    $region311: #{cache_set_and_gather.1} parent=1 // pred_check_branch
      %609 = sbr.rel (0) target = $region313
    $region312: #{cache_set_and_gather.1} parent=1 // pred_region
      %610 = dma.done [#allocation8], 2048
    $region313: #{cache_set_and_gather.1} parent=1 // pred_fallthru
      _
    %611 = vsyncpa [#allocation8], 1
  %612 = vsyncmov [#allocation2]
  %s613 = vpop.sfrf %612
  %p614 = scmp.eq.s32.totalorder %s613, 0
  %p615 = pneg %p614
  %617 = shalt.err (%p615)
  %s618 = scalar_lea.sflag [#allocation2], 1
  %619 = vsyncmov %s618
  %s620 = vpop.sfrf %619
  %p621 = scmp.eq.s32.totalorder %s620, 0
  %p622 = pneg %p621
  %624 = shalt.err (%p622)
  %s625 = scalar_lea.sflag [#allocation2], 2
  %626 = vsyncmov %s625
  %s627 = vpop.sfrf %626
  %p628 = scmp.eq.s32.totalorder %s627, 0
  %p629 = pneg %p628
  %631 = shalt.err (%p629)
  %s632 = scalar_lea.sflag [#allocation2], 3
  %633 = vsyncmov %s632
  %s634 = vpop.sfrf %633
  %p635 = scmp.eq.s32.totalorder %s634, 0
  %p636 = pneg %p635
  %638 = shalt.err (%p636)
  %s639 = scalar_lea.sflag [#allocation2], 4
  %640 = vsyncmov %s639
  %s641 = vpop.sfrf %640
  %p642 = scmp.eq.s32.totalorder %s641, 0
  %p643 = pneg %p642
  %645 = shalt.err (%p643)
  %s646 = scalar_lea.sflag [#allocation2], 5
  %647 = vsyncmov %s646
  %s648 = vpop.sfrf %647
  %p649 = scmp.eq.s32.totalorder %s648, 0
  %p650 = pneg %p649
  %652 = shalt.err (%p650)
  %s653 = scalar_lea.sflag [#allocation2], 6
  %654 = vsyncmov %s653
  %s655 = vpop.sfrf %654
  %p656 = scmp.eq.s32.totalorder %s655, 0
  %p657 = pneg %p656
  %659 = shalt.err (%p657)
  %s660 = scalar_lea.sflag [#allocation2], 7
  %661 = vsyncmov %s660
  %s662 = vpop.sfrf %661
  %p663 = scmp.eq.s32.totalorder %s662, 0
  %p664 = pneg %p663
  %666 = shalt.err (%p664)
  %667 = vsyncmov [#allocation3]
  %s668 = vpop.sfrf %667
  %p669 = scmp.eq.s32.totalorder %s668, 0
  %p670 = pneg %p669
  %672 = shalt.err (%p670)
  %s673 = scalar_lea.sflag [#allocation3], 1
  %674 = vsyncmov %s673
  %s675 = vpop.sfrf %674
  %p676 = scmp.eq.s32.totalorder %s675, 0
  %p677 = pneg %p676
  %679 = shalt.err (%p677)
  %s680 = scalar_lea.sflag [#allocation3], 2
  %681 = vsyncmov %s680
  %s682 = vpop.sfrf %681
  %p683 = scmp.eq.s32.totalorder %s682, 0
  %p684 = pneg %p683
  %686 = shalt.err (%p684)
  %s687 = scalar_lea.sflag [#allocation3], 3
  %688 = vsyncmov %s687
  %s689 = vpop.sfrf %688
  %p690 = scmp.eq.s32.totalorder %s689, 0
  %p691 = pneg %p690
  %693 = shalt.err (%p691)
  %s694 = scalar_lea.sflag [#allocation3], 4
  %695 = vsyncmov %s694
  %s696 = vpop.sfrf %695
  %p697 = scmp.eq.s32.totalorder %s696, 0
  %p698 = pneg %p697
  %700 = shalt.err (%p698)
  %s701 = scalar_lea.sflag [#allocation3], 5
  %702 = vsyncmov %s701
  %s703 = vpop.sfrf %702
  %p704 = scmp.eq.s32.totalorder %s703, 0
  %p705 = pneg %p704
  %707 = shalt.err (%p705)
  %s708 = scalar_lea.sflag [#allocation3], 6
  %709 = vsyncmov %s708
  %s710 = vpop.sfrf %709
  %p711 = scmp.eq.s32.totalorder %s710, 0
  %p712 = pneg %p711
  %714 = shalt.err (%p712)
  %s715 = scalar_lea.sflag [#allocation3], 7
  %716 = vsyncmov %s715
  %s717 = vpop.sfrf %716
  %p718 = scmp.eq.s32.totalorder %s717, 0
  %p719 = pneg %p718
  %721 = shalt.err (%p719)

</llo_original>
